<compile_context>
chip_gen: v6e
topology: v6e:2x2x1
jax: 0.10.0
libtpu: 0.0.40
codegen_flags: <defaults>
</compile_context>

<pallas_src>
import jax
import jax.numpy as jnp
from jax import lax
from jax.experimental import pallas as pl
from jax.experimental.pallas import tpu as pltpu


# ----------------------- fused Classifier kernel ----------------------------
def _make_classifier_kernel(bidirectional, T, B, I, H):
    """Builds the fused (bi)LSTM + Linear(1,1) kernel body."""
    ndir = 2 if bidirectional else 1
    G = ndir * H                      # packed hidden width
    GW = 4 * G                        # packed gate width [i | f | g | o]

    def kernel(x_ref, wih_ref, whh_ref, b_ref, wc_ref, bc_ref, y_ref):
        # ---- hoisted loop invariants (computed exactly once) ----------------
        whh = whh_ref[...]                                      # (G, GW) pre-scaled
        lane = lax.broadcasted_iota(jnp.int32, (B, GW), 1)
        g_band = (lane >= 2 * G) & (lane < 3 * G)               # tanh-only lanes
        lane_t = lax.broadcasted_iota(jnp.int32, (1, T), 1)     # feature lanes

        # One big input projection (+ bias) for the whole sequence and BOTH
        # directions.  Removes one MXU push and the bias add from every step
        # of the serial recurrence.
        xp = (jnp.dot(x_ref[...], wih_ref[...],
                      preferred_element_type=jnp.float32)
              + jnp.broadcast_to(b_ref[...], (T * B, GW)))      # (T*B, GW)

        if bidirectional:
            # Forward-direction columns within each gate band (gate-major,
            # direction-minor packing: [i_f i_b | f_f f_b | g_f g_b | o_f o_b]).
            fwd_cols = (lane % G) < H

        h = jnp.zeros((B, G), jnp.float32)       # packed [h_fwd | h_bwd]
        c = jnp.zeros((B, G), jnp.float32)
        feat = jnp.zeros((1, T), jnp.float32)    # lane-dense feature accumulator

        # Fully unrolled time loop (T static & small): one dot + one tanh pass
        # per step covers both directions via the packed state.
        for s in range(T):
            if bidirectional:
                # Forward gates take x[s], backward gates take x[T-1-s].
                # This select only depends on xp, so it sits off the
                # h -> dot -> activation critical chain.
                pre = jnp.where(fwd_cols,
                                xp[s * B:(s + 1) * B, :],
                                xp[(T - 1 - s) * B:(T - s) * B, :])
            else:
                pre = xp[s * B:(s + 1) * B, :]

            gates = pre + jnp.dot(h, whh, preferred_element_type=jnp.float32)

            # Single EUP pass: i/f/o columns were pre-scaled by 0.5, so
            # sigmoid(z) = 0.5 * tanh(z / 2) + 0.5.
            t = jnp.tanh(gates)
            act = jnp.where(g_band, t, 0.5 * t + 0.5)

            i_g = act[:, 0 * G:1 * G]
            f_g = act[:, 1 * G:2 * G]
            g_g = act[:, 2 * G:3 * G]
            o_g = act[:, 3 * G:4 * G]
            c = f_g * c + i_g * g_g
            h = o_g * jnp.tanh(c)

            if bidirectional:
                # out[:, -1, 0]: forward dir, batch B-1, hidden 0, time s.
                feat = feat + jnp.where(lane_t == s, h[B - 1:B, 0:1], 0.0)
                # out[:, 0, -1]: backward dir, batch 0, hidden H-1, time T-1-s.
                feat = feat + jnp.where(lane_t == (T - 1 - s),
                                        h[0:1, G - 1:G], 0.0)
            else:
                # out[:, -1, :] with H == 1: batch B-1, hidden 0, time s.
                feat = feat + jnp.where(lane_t == s, h[B - 1:B, 0:1], 0.0)

        if bidirectional:
            feat = feat * 0.5

        # Fused Linear(1, 1) epilogue (scalar affine).
        y_ref[...] = feat * wc_ref[0, 0] + bc_ref[0, 0]

    return kernel


def classifier_forward(x, packed, bidirectional):
    """Single fused Pallas call mirroring Classifier.forward exactly."""
    T, B, I = x.shape
    H = packed["hidden_size"]
    if not bidirectional:
        # PyTorch's Linear(1, 1) head only works when the LSTM feature is 1-wide.
        assert H == 1, ("non-bidirectional Classifier requires hidden_size == 1 "
                        "(Linear(1,1) head), matching the PyTorch module.")

    kernel = _make_classifier_kernel(bidirectional, T, B, I, H)
    x2d = x.reshape(T * B, I)   # contiguous HBM reshape (metadata only)
    inputs = (x2d, packed["wih"], packed["whh"], packed["b"],
              packed["w_c"], packed["b_c"])
    y = pl.pallas_call(
        kernel,
        out_shape=jax.ShapeDtypeStruct((1, T), jnp.float32),
        in_specs=[pl.BlockSpec(memory_space=pltpu.MemorySpace.VMEM)
                  for _ in inputs],
        out_specs=pl.BlockSpec(memory_space=pltpu.MemorySpace.VMEM),
    )(*inputs)
    return y.reshape(T, 1)


# ------------------------------ param packing --------------------------------
def pack_params(params, bidirectional):
    """Pack raw (PyTorch-layout) params into the kernel's fused layout.

    Done ONCE at init time: transposed, both directions block-diagonally merged
    in gate-major / direction-minor column order, and the i/f/o columns
    pre-scaled by 0.5 for the single-tanh activation trick.
    """
    dirs = [params["fwd"]] + ([params["bwd"]] if bidirectional else [])
    ndir = len(dirs)
    w_ih0 = dirs[0][0]
    H = w_ih0.shape[0] // 4
    I = w_ih0.shape[1]
    G = ndir * H

    wih_pk = jnp.zeros((I, 4 * G), jnp.float32)
    whh_pk = jnp.zeros((G, 4 * G), jnp.float32)
    b_pk = jnp.zeros((1, 4 * G), jnp.float32)
    for d, (w_ih, w_hh, b_ih, b_hh) in enumerate(dirs):
        wih_t, whh_t, b = w_ih.T, w_hh.T, b_ih + b_hh   # (I,4H), (H,4H), (4H,)
        for k in range(4):                               # gates [i, f, g, o]
            col = slice(k * G + d * H, k * G + (d + 1) * H)
            src = slice(k * H, (k + 1) * H)
            wih_pk = wih_pk.at[:, col].set(wih_t[:, src])
            whh_pk = whh_pk.at[d * H:(d + 1) * H, col].set(whh_t[:, src])
            b_pk = b_pk.at[0, col].set(b[src])

    cols = jnp.arange(4 * G)
    scale = jnp.where((cols >= 2 * G) & (cols < 3 * G), 1.0, 0.5)  # g keeps 1.0
    return {"wih": wih_pk * scale, "whh": whh_pk * scale, "b": b_pk * scale,
            "w_c": params["w_c"], "b_c": params["b_c"], "hidden_size": H}


# ------------------------------ reference -----------------------------------
def lstm_ref(x, w_ih, w_hh, b_ih, b_hh):
    T, B, _ = x.shape
    H = w_hh.shape[1]

    def step(carry, xt):
        h, c = carry
        gates = xt @ w_ih.T + h @ w_hh.T + b_ih + b_hh
        i = jax.nn.sigmoid(gates[:, :H])
        f = jax.nn.sigmoid(gates[:, H:2 * H])
        g = jnp.tanh(gates[:, 2 * H:3 * H])
        o = jax.nn.sigmoid(gates[:, 3 * H:])
        c = f * c + i * g
        h = o * jnp.tanh(c)
        return (h, c), h

    init = (jnp.zeros((B, H), jnp.float32), jnp.zeros((B, H), jnp.float32))
    _, hs = lax.scan(step, init, x)
    return hs


def classifier_ref(x, params, bidirectional):
    out_f = lstm_ref(x, *params["fwd"])
    if bidirectional:
        out_b = jnp.flip(lstm_ref(jnp.flip(x, 0), *params["bwd"]), 0)
        out = jnp.concatenate([out_f, out_b], axis=-1)
        feat = ((out[:, 0, -1] + out[:, -1, 0]) / 2.0).reshape(-1, 1)
    else:
        feat = out_f[:, -1, :]
    return feat @ params["w_c"].T + params["b_c"][0]


# -------------------------------- params ------------------------------------
def init_lstm_dir(key, input_size, hidden_size):
    k = 1.0 / jnp.sqrt(jnp.float32(hidden_size))
    ks = jax.random.split(key, 4)
    w_ih = jax.random.uniform(ks[0], (4 * hidden_size, input_size),
                              jnp.float32, -k, k)
    w_hh = jax.random.uniform(ks[1], (4 * hidden_size, hidden_size),
                              jnp.float32, -k, k)
    b_ih = jax.random.uniform(ks[2], (4 * hidden_size,), jnp.float32, -k, k)
    b_hh = jax.random.uniform(ks[3], (4 * hidden_size,), jnp.float32, -k, k)
    return (w_ih, w_hh, b_ih, b_hh)


def init_params(key, input_size, hidden_size, bidirectional):
    k_f, k_b, k_cw, k_cb = jax.random.split(key, 4)
    params = {"fwd": init_lstm_dir(k_f, input_size, hidden_size)}
    if bidirectional:
        params["bwd"] = init_lstm_dir(k_b, input_size, hidden_size)
    params["w_c"] = jax.random.uniform(k_cw, (1, 1), jnp.float32, -1.0, 1.0)
    params["b_c"] = jax.random.uniform(k_cb, (1, 1), jnp.float32, -1.0, 1.0)
    return params


# --------------------------------- main --------------------------------------
if __name__ == "__main__":
    key = jax.random.PRNGKey(0)
    k_params, k_x, k_params2, k_x2 = jax.random.split(key, 4)

    ok = True

    # Case 1: bidirectional=True (hidden_size free to be > 1).
    seq_len, batch, input_size, hidden_size = 8, 4, 16, 32
    params = init_params(k_params, input_size, hidden_size, bidirectional=True)
    packed = pack_params(params, bidirectional=True)
    x = jax.random.normal(k_x, (seq_len, batch, input_size), jnp.float32)
    y = classifier_forward(x, packed, bidirectional=True)
    jax.block_until_ready(y)
    y_ref = classifier_ref(x, params, bidirectional=True)
    ok &= (y.shape == (seq_len, 1))
    ok &= bool(jnp.allclose(y, y_ref, atol=1e-4, rtol=1e-4))

    # Case 2: bidirectional=False (PyTorch's Linear(1,1) forces hidden_size=1).
    seq_len2, batch2, input_size2, hidden_size2 = 8, 4, 16, 1
    params2 = init_params(k_params2, input_size2, hidden_size2,
                          bidirectional=False)
    packed2 = pack_params(params2, bidirectional=False)
    x2 = jax.random.normal(k_x2, (seq_len2, batch2, input_size2), jnp.float32)
    y2 = classifier_forward(x2, packed2, bidirectional=False)
    jax.block_until_ready(y2)
    y2_ref = classifier_ref(x2, params2, bidirectional=False)
    ok &= (y2.shape == (seq_len2, 1))
    ok &= bool(jnp.allclose(y2, y2_ref, atol=1e-4, rtol=1e-4))

    if ok:
        print("KERNEL_OK")
    else:
        print("KERNEL_MISMATCH")
</pallas_src>

<mosaic_0001>
module attributes {stable_mosaic.version = 11 : i64} {
  func.func @kernel(%arg0: memref<32x16xf32, #tpu.memory_space<vmem>>, %arg1: memref<16x256xf32, #tpu.memory_space<vmem>>, %arg2: memref<64x256xf32, #tpu.memory_space<vmem>>, %arg3: memref<1x256xf32, #tpu.memory_space<vmem>>, %arg4: memref<1x1xf32, #tpu.memory_space<vmem>>, %arg5: memref<1x1xf32, #tpu.memory_space<vmem>>, %arg6: memref<1x8xf32, #tpu.memory_space<vmem>>) attributes {dimension_semantics = [], scalar_prefetch = 0 : i64, scratch_operands = 0 : i64, tpu.core_type = #tpu.core_type<tc>} {
    %c0 = arith.constant 0 : index
    %c0_0 = arith.constant 0 : index
    %0 = vector.load %arg2[%c0, %c0_0] : memref<64x256xf32, #tpu.memory_space<vmem>>, vector<64x256xf32>
    %1 = tpu.iota {dimensions = array<i32: 1>} : vector<4x256xi32>
    %c128_i32 = arith.constant 128 : i32
    %2 = vector.broadcast %c128_i32 : i32 to vector<4x256xi32>
    %3 = arith.cmpi sge, %1, %2 : vector<4x256xi32>
    %c192_i32 = arith.constant 192 : i32
    %4 = vector.broadcast %c192_i32 : i32 to vector<4x256xi32>
    %5 = arith.cmpi slt, %1, %4 : vector<4x256xi32>
    %6 = arith.andi %3, %5 : vector<4x256xi1>
    %7 = tpu.iota {dimensions = array<i32: 1>} : vector<1x8xi32>
    %c0_1 = arith.constant 0 : index
    %c0_2 = arith.constant 0 : index
    %8 = vector.load %arg0[%c0_1, %c0_2] : memref<32x16xf32, #tpu.memory_space<vmem>>, vector<32x16xf32>
    %c0_3 = arith.constant 0 : index
    %c0_4 = arith.constant 0 : index
    %9 = vector.load %arg1[%c0_3, %c0_4] : memref<16x256xf32, #tpu.memory_space<vmem>>, vector<16x256xf32>
    %cst = arith.constant dense<0.000000e+00> : vector<32x256xf32>
    %10 = tpu.matmul %8, %9, %cst {dimension_numbers = #tpu.dot_dimension_numbers<[1], [0], [0], [1], [0, 0, 1, 1], [], []>} : vector<32x16xf32>, vector<16x256xf32>, vector<32x256xf32> -> vector<32x256xf32>
    %c0_5 = arith.constant 0 : index
    %c0_6 = arith.constant 0 : index
    %11 = vector.load %arg3[%c0_5, %c0_6] : memref<1x256xf32, #tpu.memory_space<vmem>>, vector<1x256xf32>
    %12 = vector.shape_cast %11 : vector<1x256xf32> to vector<1x256xf32>
    %13 = vector.broadcast %12 : vector<1x256xf32> to vector<32x256xf32>
    %14 = arith.addf %10, %13 : vector<32x256xf32>
    %c64_i32 = arith.constant 64 : i32
    %c0_i32 = arith.constant 0 : i32
    %15 = arith.cmpi eq, %c64_i32, %c0_i32 : i32
    %c1_i32 = arith.constant 1 : i32
    %16 = arith.select %15, %c1_i32, %c64_i32 : i32
    %17 = vector.broadcast %16 : i32 to vector<4x256xi32>
    %18 = arith.remsi %1, %17 : vector<4x256xi32>
    %c0_i32_7 = arith.constant 0 : i32
    %19 = vector.broadcast %c0_i32_7 : i32 to vector<4x256xi32>
    %20 = arith.cmpi ne, %18, %19 : vector<4x256xi32>
    %c0_i32_8 = arith.constant 0 : i32
    %21 = vector.broadcast %c0_i32_8 : i32 to vector<4x256xi32>
    %22 = arith.cmpi slt, %18, %21 : vector<4x256xi32>
    %c0_i32_9 = arith.constant 0 : i32
    %23 = arith.cmpi slt, %16, %c0_i32_9 : i32
    %24 = vector.broadcast %23 : i1 to vector<4x256xi1>
    %25 = vector.broadcast %24 : vector<4x256xi1> to vector<4x256xi1>
    %26 = arith.xori %22, %25 : vector<4x256xi1>
    %27 = arith.andi %26, %20 : vector<4x256xi1>
    %28 = vector.broadcast %16 : i32 to vector<4x256xi32>
    %29 = arith.addi %18, %28 : vector<4x256xi32>
    %30 = arith.select %27, %29, %18 : vector<4x256xi1>, vector<4x256xi32>
    %c32_i32 = arith.constant 32 : i32
    %31 = vector.broadcast %c32_i32 : i32 to vector<4x256xi32>
    %32 = arith.cmpi slt, %30, %31 : vector<4x256xi32>
    %cst_10 = arith.constant 0.000000e+00 : f32
    %33 = vector.broadcast %cst_10 : f32 to vector<4x64xf32>
    %cst_11 = arith.constant 0.000000e+00 : f32
    %34 = vector.broadcast %cst_11 : f32 to vector<4x64xf32>
    %cst_12 = arith.constant 0.000000e+00 : f32
    %35 = vector.broadcast %cst_12 : f32 to vector<1x8xf32>
    %36 = vector.extract_strided_slice %14 {offsets = [0, 0], sizes = [4, 256], strides = [1, 1]} : vector<32x256xf32> to vector<4x256xf32>
    %37 = vector.extract_strided_slice %14 {offsets = [28, 0], sizes = [4, 256], strides = [1, 1]} : vector<32x256xf32> to vector<4x256xf32>
    %38 = arith.select %32, %36, %37 : vector<4x256xi1>, vector<4x256xf32>
    %cst_13 = arith.constant dense<0.000000e+00> : vector<4x256xf32>
    %39 = tpu.matmul %33, %0, %cst_13 {dimension_numbers = #tpu.dot_dimension_numbers<[1], [0], [0], [1], [0, 0, 1, 1], [], []>} : vector<4x64xf32>, vector<64x256xf32>, vector<4x256xf32> -> vector<4x256xf32>
    %40 = arith.addf %38, %39 : vector<4x256xf32>
    %41 = math.tanh %40 : vector<4x256xf32>
    %cst_14 = arith.constant 5.000000e-01 : f32
    %42 = vector.broadcast %cst_14 : f32 to vector<4x256xf32>
    %43 = arith.mulf %42, %41 : vector<4x256xf32>
    %cst_15 = arith.constant 5.000000e-01 : f32
    %44 = vector.broadcast %cst_15 : f32 to vector<4x256xf32>
    %45 = arith.addf %43, %44 : vector<4x256xf32>
    %46 = arith.select %6, %41, %45 : vector<4x256xi1>, vector<4x256xf32>
    %47 = vector.extract_strided_slice %46 {offsets = [0, 0], sizes = [4, 64], strides = [1, 1]} : vector<4x256xf32> to vector<4x64xf32>
    %48 = vector.extract_strided_slice %46 {offsets = [0, 64], sizes = [4, 64], strides = [1, 1]} : vector<4x256xf32> to vector<4x64xf32>
    %49 = vector.extract_strided_slice %46 {offsets = [0, 128], sizes = [4, 64], strides = [1, 1]} : vector<4x256xf32> to vector<4x64xf32>
    %50 = vector.extract_strided_slice %46 {offsets = [0, 192], sizes = [4, 64], strides = [1, 1]} : vector<4x256xf32> to vector<4x64xf32>
    %51 = arith.mulf %48, %34 : vector<4x64xf32>
    %52 = arith.mulf %47, %49 : vector<4x64xf32>
    %53 = arith.addf %51, %52 : vector<4x64xf32>
    %54 = math.tanh %53 : vector<4x64xf32>
    %55 = arith.mulf %50, %54 : vector<4x64xf32>
    %c0_i32_16 = arith.constant 0 : i32
    %56 = vector.broadcast %c0_i32_16 : i32 to vector<1x8xi32>
    %57 = arith.cmpi eq, %7, %56 : vector<1x8xi32>
    %58 = vector.extract_strided_slice %55 {offsets = [3, 0], sizes = [1, 1], strides = [1, 1]} : vector<4x64xf32> to vector<1x1xf32>
    %cst_17 = arith.constant 0.000000e+00 : f32
    %59 = vector.shape_cast %58 : vector<1x1xf32> to vector<1x1xf32>
    %60 = vector.broadcast %59 : vector<1x1xf32> to vector<1x8xf32>
    %61 = vector.broadcast %cst_17 : f32 to vector<1x8xf32>
    %62 = arith.select %57, %60, %61 : vector<1x8xi1>, vector<1x8xf32>
    %63 = arith.addf %35, %62 : vector<1x8xf32>
    %c7_i32 = arith.constant 7 : i32
    %64 = vector.broadcast %c7_i32 : i32 to vector<1x8xi32>
    %65 = arith.cmpi eq, %7, %64 : vector<1x8xi32>
    %66 = vector.extract_strided_slice %55 {offsets = [0, 63], sizes = [1, 1], strides = [1, 1]} : vector<4x64xf32> to vector<1x1xf32>
    %cst_18 = arith.constant 0.000000e+00 : f32
    %67 = vector.shape_cast %66 : vector<1x1xf32> to vector<1x1xf32>
    %68 = vector.broadcast %67 : vector<1x1xf32> to vector<1x8xf32>
    %69 = vector.broadcast %cst_18 : f32 to vector<1x8xf32>
    %70 = arith.select %65, %68, %69 : vector<1x8xi1>, vector<1x8xf32>
    %71 = arith.addf %63, %70 : vector<1x8xf32>
    %72 = vector.extract_strided_slice %14 {offsets = [4, 0], sizes = [4, 256], strides = [1, 1]} : vector<32x256xf32> to vector<4x256xf32>
    %73 = vector.extract_strided_slice %14 {offsets = [24, 0], sizes = [4, 256], strides = [1, 1]} : vector<32x256xf32> to vector<4x256xf32>
    %74 = arith.select %32, %72, %73 : vector<4x256xi1>, vector<4x256xf32>
    %cst_19 = arith.constant dense<0.000000e+00> : vector<4x256xf32>
    %75 = tpu.matmul %55, %0, %cst_19 {dimension_numbers = #tpu.dot_dimension_numbers<[1], [0], [0], [1], [0, 0, 1, 1], [], []>} : vector<4x64xf32>, vector<64x256xf32>, vector<4x256xf32> -> vector<4x256xf32>
    %76 = arith.addf %74, %75 : vector<4x256xf32>
    %77 = math.tanh %76 : vector<4x256xf32>
    %cst_20 = arith.constant 5.000000e-01 : f32
    %78 = vector.broadcast %cst_20 : f32 to vector<4x256xf32>
    %79 = arith.mulf %78, %77 : vector<4x256xf32>
    %cst_21 = arith.constant 5.000000e-01 : f32
    %80 = vector.broadcast %cst_21 : f32 to vector<4x256xf32>
    %81 = arith.addf %79, %80 : vector<4x256xf32>
    %82 = arith.select %6, %77, %81 : vector<4x256xi1>, vector<4x256xf32>
    %83 = vector.extract_strided_slice %82 {offsets = [0, 0], sizes = [4, 64], strides = [1, 1]} : vector<4x256xf32> to vector<4x64xf32>
    %84 = vector.extract_strided_slice %82 {offsets = [0, 64], sizes = [4, 64], strides = [1, 1]} : vector<4x256xf32> to vector<4x64xf32>
    %85 = vector.extract_strided_slice %82 {offsets = [0, 128], sizes = [4, 64], strides = [1, 1]} : vector<4x256xf32> to vector<4x64xf32>
    %86 = vector.extract_strided_slice %82 {offsets = [0, 192], sizes = [4, 64], strides = [1, 1]} : vector<4x256xf32> to vector<4x64xf32>
    %87 = arith.mulf %84, %53 : vector<4x64xf32>
    %88 = arith.mulf %83, %85 : vector<4x64xf32>
    %89 = arith.addf %87, %88 : vector<4x64xf32>
    %90 = math.tanh %89 : vector<4x64xf32>
    %91 = arith.mulf %86, %90 : vector<4x64xf32>
    %c1_i32_22 = arith.constant 1 : i32
    %92 = vector.broadcast %c1_i32_22 : i32 to vector<1x8xi32>
    %93 = arith.cmpi eq, %7, %92 : vector<1x8xi32>
    %94 = vector.extract_strided_slice %91 {offsets = [3, 0], sizes = [1, 1], strides = [1, 1]} : vector<4x64xf32> to vector<1x1xf32>
    %cst_23 = arith.constant 0.000000e+00 : f32
    %95 = vector.shape_cast %94 : vector<1x1xf32> to vector<1x1xf32>
    %96 = vector.broadcast %95 : vector<1x1xf32> to vector<1x8xf32>
    %97 = vector.broadcast %cst_23 : f32 to vector<1x8xf32>
    %98 = arith.select %93, %96, %97 : vector<1x8xi1>, vector<1x8xf32>
    %99 = arith.addf %71, %98 : vector<1x8xf32>
    %c6_i32 = arith.constant 6 : i32
    %100 = vector.broadcast %c6_i32 : i32 to vector<1x8xi32>
    %101 = arith.cmpi eq, %7, %100 : vector<1x8xi32>
    %102 = vector.extract_strided_slice %91 {offsets = [0, 63], sizes = [1, 1], strides = [1, 1]} : vector<4x64xf32> to vector<1x1xf32>
    %cst_24 = arith.constant 0.000000e+00 : f32
    %103 = vector.shape_cast %102 : vector<1x1xf32> to vector<1x1xf32>
    %104 = vector.broadcast %103 : vector<1x1xf32> to vector<1x8xf32>
    %105 = vector.broadcast %cst_24 : f32 to vector<1x8xf32>
    %106 = arith.select %101, %104, %105 : vector<1x8xi1>, vector<1x8xf32>
    %107 = arith.addf %99, %106 : vector<1x8xf32>
    %108 = vector.extract_strided_slice %14 {offsets = [8, 0], sizes = [4, 256], strides = [1, 1]} : vector<32x256xf32> to vector<4x256xf32>
    %109 = vector.extract_strided_slice %14 {offsets = [20, 0], sizes = [4, 256], strides = [1, 1]} : vector<32x256xf32> to vector<4x256xf32>
    %110 = arith.select %32, %108, %109 : vector<4x256xi1>, vector<4x256xf32>
    %cst_25 = arith.constant dense<0.000000e+00> : vector<4x256xf32>
    %111 = tpu.matmul %91, %0, %cst_25 {dimension_numbers = #tpu.dot_dimension_numbers<[1], [0], [0], [1], [0, 0, 1, 1], [], []>} : vector<4x64xf32>, vector<64x256xf32>, vector<4x256xf32> -> vector<4x256xf32>
    %112 = arith.addf %110, %111 : vector<4x256xf32>
    %113 = math.tanh %112 : vector<4x256xf32>
    %cst_26 = arith.constant 5.000000e-01 : f32
    %114 = vector.broadcast %cst_26 : f32 to vector<4x256xf32>
    %115 = arith.mulf %114, %113 : vector<4x256xf32>
    %cst_27 = arith.constant 5.000000e-01 : f32
    %116 = vector.broadcast %cst_27 : f32 to vector<4x256xf32>
    %117 = arith.addf %115, %116 : vector<4x256xf32>
    %118 = arith.select %6, %113, %117 : vector<4x256xi1>, vector<4x256xf32>
    %119 = vector.extract_strided_slice %118 {offsets = [0, 0], sizes = [4, 64], strides = [1, 1]} : vector<4x256xf32> to vector<4x64xf32>
    %120 = vector.extract_strided_slice %118 {offsets = [0, 64], sizes = [4, 64], strides = [1, 1]} : vector<4x256xf32> to vector<4x64xf32>
    %121 = vector.extract_strided_slice %118 {offsets = [0, 128], sizes = [4, 64], strides = [1, 1]} : vector<4x256xf32> to vector<4x64xf32>
    %122 = vector.extract_strided_slice %118 {offsets = [0, 192], sizes = [4, 64], strides = [1, 1]} : vector<4x256xf32> to vector<4x64xf32>
    %123 = arith.mulf %120, %89 : vector<4x64xf32>
    %124 = arith.mulf %119, %121 : vector<4x64xf32>
    %125 = arith.addf %123, %124 : vector<4x64xf32>
    %126 = math.tanh %125 : vector<4x64xf32>
    %127 = arith.mulf %122, %126 : vector<4x64xf32>
    %c2_i32 = arith.constant 2 : i32
    %128 = vector.broadcast %c2_i32 : i32 to vector<1x8xi32>
    %129 = arith.cmpi eq, %7, %128 : vector<1x8xi32>
    %130 = vector.extract_strided_slice %127 {offsets = [3, 0], sizes = [1, 1], strides = [1, 1]} : vector<4x64xf32> to vector<1x1xf32>
    %cst_28 = arith.constant 0.000000e+00 : f32
    %131 = vector.shape_cast %130 : vector<1x1xf32> to vector<1x1xf32>
    %132 = vector.broadcast %131 : vector<1x1xf32> to vector<1x8xf32>
    %133 = vector.broadcast %cst_28 : f32 to vector<1x8xf32>
    %134 = arith.select %129, %132, %133 : vector<1x8xi1>, vector<1x8xf32>
    %135 = arith.addf %107, %134 : vector<1x8xf32>
    %c5_i32 = arith.constant 5 : i32
    %136 = vector.broadcast %c5_i32 : i32 to vector<1x8xi32>
    %137 = arith.cmpi eq, %7, %136 : vector<1x8xi32>
    %138 = vector.extract_strided_slice %127 {offsets = [0, 63], sizes = [1, 1], strides = [1, 1]} : vector<4x64xf32> to vector<1x1xf32>
    %cst_29 = arith.constant 0.000000e+00 : f32
    %139 = vector.shape_cast %138 : vector<1x1xf32> to vector<1x1xf32>
    %140 = vector.broadcast %139 : vector<1x1xf32> to vector<1x8xf32>
    %141 = vector.broadcast %cst_29 : f32 to vector<1x8xf32>
    %142 = arith.select %137, %140, %141 : vector<1x8xi1>, vector<1x8xf32>
    %143 = arith.addf %135, %142 : vector<1x8xf32>
    %144 = vector.extract_strided_slice %14 {offsets = [12, 0], sizes = [4, 256], strides = [1, 1]} : vector<32x256xf32> to vector<4x256xf32>
    %145 = vector.extract_strided_slice %14 {offsets = [16, 0], sizes = [4, 256], strides = [1, 1]} : vector<32x256xf32> to vector<4x256xf32>
    %146 = arith.select %32, %144, %145 : vector<4x256xi1>, vector<4x256xf32>
    %cst_30 = arith.constant dense<0.000000e+00> : vector<4x256xf32>
    %147 = tpu.matmul %127, %0, %cst_30 {dimension_numbers = #tpu.dot_dimension_numbers<[1], [0], [0], [1], [0, 0, 1, 1], [], []>} : vector<4x64xf32>, vector<64x256xf32>, vector<4x256xf32> -> vector<4x256xf32>
    %148 = arith.addf %146, %147 : vector<4x256xf32>
    %149 = math.tanh %148 : vector<4x256xf32>
    %cst_31 = arith.constant 5.000000e-01 : f32
    %150 = vector.broadcast %cst_31 : f32 to vector<4x256xf32>
    %151 = arith.mulf %150, %149 : vector<4x256xf32>
    %cst_32 = arith.constant 5.000000e-01 : f32
    %152 = vector.broadcast %cst_32 : f32 to vector<4x256xf32>
    %153 = arith.addf %151, %152 : vector<4x256xf32>
    %154 = arith.select %6, %149, %153 : vector<4x256xi1>, vector<4x256xf32>
    %155 = vector.extract_strided_slice %154 {offsets = [0, 0], sizes = [4, 64], strides = [1, 1]} : vector<4x256xf32> to vector<4x64xf32>
    %156 = vector.extract_strided_slice %154 {offsets = [0, 64], sizes = [4, 64], strides = [1, 1]} : vector<4x256xf32> to vector<4x64xf32>
    %157 = vector.extract_strided_slice %154 {offsets = [0, 128], sizes = [4, 64], strides = [1, 1]} : vector<4x256xf32> to vector<4x64xf32>
    %158 = vector.extract_strided_slice %154 {offsets = [0, 192], sizes = [4, 64], strides = [1, 1]} : vector<4x256xf32> to vector<4x64xf32>
    %159 = arith.mulf %156, %125 : vector<4x64xf32>
    %160 = arith.mulf %155, %157 : vector<4x64xf32>
    %161 = arith.addf %159, %160 : vector<4x64xf32>
    %162 = math.tanh %161 : vector<4x64xf32>
    %163 = arith.mulf %158, %162 : vector<4x64xf32>
    %c3_i32 = arith.constant 3 : i32
    %164 = vector.broadcast %c3_i32 : i32 to vector<1x8xi32>
    %165 = arith.cmpi eq, %7, %164 : vector<1x8xi32>
    %166 = vector.extract_strided_slice %163 {offsets = [3, 0], sizes = [1, 1], strides = [1, 1]} : vector<4x64xf32> to vector<1x1xf32>
    %cst_33 = arith.constant 0.000000e+00 : f32
    %167 = vector.shape_cast %166 : vector<1x1xf32> to vector<1x1xf32>
    %168 = vector.broadcast %167 : vector<1x1xf32> to vector<1x8xf32>
    %169 = vector.broadcast %cst_33 : f32 to vector<1x8xf32>
    %170 = arith.select %165, %168, %169 : vector<1x8xi1>, vector<1x8xf32>
    %171 = arith.addf %143, %170 : vector<1x8xf32>
    %c4_i32 = arith.constant 4 : i32
    %172 = vector.broadcast %c4_i32 : i32 to vector<1x8xi32>
    %173 = arith.cmpi eq, %7, %172 : vector<1x8xi32>
    %174 = vector.extract_strided_slice %163 {offsets = [0, 63], sizes = [1, 1], strides = [1, 1]} : vector<4x64xf32> to vector<1x1xf32>
    %cst_34 = arith.constant 0.000000e+00 : f32
    %175 = vector.shape_cast %174 : vector<1x1xf32> to vector<1x1xf32>
    %176 = vector.broadcast %175 : vector<1x1xf32> to vector<1x8xf32>
    %177 = vector.broadcast %cst_34 : f32 to vector<1x8xf32>
    %178 = arith.select %173, %176, %177 : vector<1x8xi1>, vector<1x8xf32>
    %179 = arith.addf %171, %178 : vector<1x8xf32>
    %180 = vector.extract_strided_slice %14 {offsets = [16, 0], sizes = [4, 256], strides = [1, 1]} : vector<32x256xf32> to vector<4x256xf32>
    %181 = vector.extract_strided_slice %14 {offsets = [12, 0], sizes = [4, 256], strides = [1, 1]} : vector<32x256xf32> to vector<4x256xf32>
    %182 = arith.select %32, %180, %181 : vector<4x256xi1>, vector<4x256xf32>
    %cst_35 = arith.constant dense<0.000000e+00> : vector<4x256xf32>
    %183 = tpu.matmul %163, %0, %cst_35 {dimension_numbers = #tpu.dot_dimension_numbers<[1], [0], [0], [1], [0, 0, 1, 1], [], []>} : vector<4x64xf32>, vector<64x256xf32>, vector<4x256xf32> -> vector<4x256xf32>
    %184 = arith.addf %182, %183 : vector<4x256xf32>
    %185 = math.tanh %184 : vector<4x256xf32>
    %cst_36 = arith.constant 5.000000e-01 : f32
    %186 = vector.broadcast %cst_36 : f32 to vector<4x256xf32>
    %187 = arith.mulf %186, %185 : vector<4x256xf32>
    %cst_37 = arith.constant 5.000000e-01 : f32
    %188 = vector.broadcast %cst_37 : f32 to vector<4x256xf32>
    %189 = arith.addf %187, %188 : vector<4x256xf32>
    %190 = arith.select %6, %185, %189 : vector<4x256xi1>, vector<4x256xf32>
    %191 = vector.extract_strided_slice %190 {offsets = [0, 0], sizes = [4, 64], strides = [1, 1]} : vector<4x256xf32> to vector<4x64xf32>
    %192 = vector.extract_strided_slice %190 {offsets = [0, 64], sizes = [4, 64], strides = [1, 1]} : vector<4x256xf32> to vector<4x64xf32>
    %193 = vector.extract_strided_slice %190 {offsets = [0, 128], sizes = [4, 64], strides = [1, 1]} : vector<4x256xf32> to vector<4x64xf32>
    %194 = vector.extract_strided_slice %190 {offsets = [0, 192], sizes = [4, 64], strides = [1, 1]} : vector<4x256xf32> to vector<4x64xf32>
    %195 = arith.mulf %192, %161 : vector<4x64xf32>
    %196 = arith.mulf %191, %193 : vector<4x64xf32>
    %197 = arith.addf %195, %196 : vector<4x64xf32>
    %198 = math.tanh %197 : vector<4x64xf32>
    %199 = arith.mulf %194, %198 : vector<4x64xf32>
    %c4_i32_38 = arith.constant 4 : i32
    %200 = vector.broadcast %c4_i32_38 : i32 to vector<1x8xi32>
    %201 = arith.cmpi eq, %7, %200 : vector<1x8xi32>
    %202 = vector.extract_strided_slice %199 {offsets = [3, 0], sizes = [1, 1], strides = [1, 1]} : vector<4x64xf32> to vector<1x1xf32>
    %cst_39 = arith.constant 0.000000e+00 : f32
    %203 = vector.shape_cast %202 : vector<1x1xf32> to vector<1x1xf32>
    %204 = vector.broadcast %203 : vector<1x1xf32> to vector<1x8xf32>
    %205 = vector.broadcast %cst_39 : f32 to vector<1x8xf32>
    %206 = arith.select %201, %204, %205 : vector<1x8xi1>, vector<1x8xf32>
    %207 = arith.addf %179, %206 : vector<1x8xf32>
    %c3_i32_40 = arith.constant 3 : i32
    %208 = vector.broadcast %c3_i32_40 : i32 to vector<1x8xi32>
    %209 = arith.cmpi eq, %7, %208 : vector<1x8xi32>
    %210 = vector.extract_strided_slice %199 {offsets = [0, 63], sizes = [1, 1], strides = [1, 1]} : vector<4x64xf32> to vector<1x1xf32>
    %cst_41 = arith.constant 0.000000e+00 : f32
    %211 = vector.shape_cast %210 : vector<1x1xf32> to vector<1x1xf32>
    %212 = vector.broadcast %211 : vector<1x1xf32> to vector<1x8xf32>
    %213 = vector.broadcast %cst_41 : f32 to vector<1x8xf32>
    %214 = arith.select %209, %212, %213 : vector<1x8xi1>, vector<1x8xf32>
    %215 = arith.addf %207, %214 : vector<1x8xf32>
    %216 = vector.extract_strided_slice %14 {offsets = [20, 0], sizes = [4, 256], strides = [1, 1]} : vector<32x256xf32> to vector<4x256xf32>
    %217 = vector.extract_strided_slice %14 {offsets = [8, 0], sizes = [4, 256], strides = [1, 1]} : vector<32x256xf32> to vector<4x256xf32>
    %218 = arith.select %32, %216, %217 : vector<4x256xi1>, vector<4x256xf32>
    %cst_42 = arith.constant dense<0.000000e+00> : vector<4x256xf32>
    %219 = tpu.matmul %199, %0, %cst_42 {dimension_numbers = #tpu.dot_dimension_numbers<[1], [0], [0], [1], [0, 0, 1, 1], [], []>} : vector<4x64xf32>, vector<64x256xf32>, vector<4x256xf32> -> vector<4x256xf32>
    %220 = arith.addf %218, %219 : vector<4x256xf32>
    %221 = math.tanh %220 : vector<4x256xf32>
    %cst_43 = arith.constant 5.000000e-01 : f32
    %222 = vector.broadcast %cst_43 : f32 to vector<4x256xf32>
    %223 = arith.mulf %222, %221 : vector<4x256xf32>
    %cst_44 = arith.constant 5.000000e-01 : f32
    %224 = vector.broadcast %cst_44 : f32 to vector<4x256xf32>
    %225 = arith.addf %223, %224 : vector<4x256xf32>
    %226 = arith.select %6, %221, %225 : vector<4x256xi1>, vector<4x256xf32>
    %227 = vector.extract_strided_slice %226 {offsets = [0, 0], sizes = [4, 64], strides = [1, 1]} : vector<4x256xf32> to vector<4x64xf32>
    %228 = vector.extract_strided_slice %226 {offsets = [0, 64], sizes = [4, 64], strides = [1, 1]} : vector<4x256xf32> to vector<4x64xf32>
    %229 = vector.extract_strided_slice %226 {offsets = [0, 128], sizes = [4, 64], strides = [1, 1]} : vector<4x256xf32> to vector<4x64xf32>
    %230 = vector.extract_strided_slice %226 {offsets = [0, 192], sizes = [4, 64], strides = [1, 1]} : vector<4x256xf32> to vector<4x64xf32>
    %231 = arith.mulf %228, %197 : vector<4x64xf32>
    %232 = arith.mulf %227, %229 : vector<4x64xf32>
    %233 = arith.addf %231, %232 : vector<4x64xf32>
    %234 = math.tanh %233 : vector<4x64xf32>
    %235 = arith.mulf %230, %234 : vector<4x64xf32>
    %c5_i32_45 = arith.constant 5 : i32
    %236 = vector.broadcast %c5_i32_45 : i32 to vector<1x8xi32>
    %237 = arith.cmpi eq, %7, %236 : vector<1x8xi32>
    %238 = vector.extract_strided_slice %235 {offsets = [3, 0], sizes = [1, 1], strides = [1, 1]} : vector<4x64xf32> to vector<1x1xf32>
    %cst_46 = arith.constant 0.000000e+00 : f32
    %239 = vector.shape_cast %238 : vector<1x1xf32> to vector<1x1xf32>
    %240 = vector.broadcast %239 : vector<1x1xf32> to vector<1x8xf32>
    %241 = vector.broadcast %cst_46 : f32 to vector<1x8xf32>
    %242 = arith.select %237, %240, %241 : vector<1x8xi1>, vector<1x8xf32>
    %243 = arith.addf %215, %242 : vector<1x8xf32>
    %c2_i32_47 = arith.constant 2 : i32
    %244 = vector.broadcast %c2_i32_47 : i32 to vector<1x8xi32>
    %245 = arith.cmpi eq, %7, %244 : vector<1x8xi32>
    %246 = vector.extract_strided_slice %235 {offsets = [0, 63], sizes = [1, 1], strides = [1, 1]} : vector<4x64xf32> to vector<1x1xf32>
    %cst_48 = arith.constant 0.000000e+00 : f32
    %247 = vector.shape_cast %246 : vector<1x1xf32> to vector<1x1xf32>
    %248 = vector.broadcast %247 : vector<1x1xf32> to vector<1x8xf32>
    %249 = vector.broadcast %cst_48 : f32 to vector<1x8xf32>
    %250 = arith.select %245, %248, %249 : vector<1x8xi1>, vector<1x8xf32>
    %251 = arith.addf %243, %250 : vector<1x8xf32>
    %252 = vector.extract_strided_slice %14 {offsets = [24, 0], sizes = [4, 256], strides = [1, 1]} : vector<32x256xf32> to vector<4x256xf32>
    %253 = vector.extract_strided_slice %14 {offsets = [4, 0], sizes = [4, 256], strides = [1, 1]} : vector<32x256xf32> to vector<4x256xf32>
    %254 = arith.select %32, %252, %253 : vector<4x256xi1>, vector<4x256xf32>
    %cst_49 = arith.constant dense<0.000000e+00> : vector<4x256xf32>
    %255 = tpu.matmul %235, %0, %cst_49 {dimension_numbers = #tpu.dot_dimension_numbers<[1], [0], [0], [1], [0, 0, 1, 1], [], []>} : vector<4x64xf32>, vector<64x256xf32>, vector<4x256xf32> -> vector<4x256xf32>
    %256 = arith.addf %254, %255 : vector<4x256xf32>
    %257 = math.tanh %256 : vector<4x256xf32>
    %cst_50 = arith.constant 5.000000e-01 : f32
    %258 = vector.broadcast %cst_50 : f32 to vector<4x256xf32>
    %259 = arith.mulf %258, %257 : vector<4x256xf32>
    %cst_51 = arith.constant 5.000000e-01 : f32
    %260 = vector.broadcast %cst_51 : f32 to vector<4x256xf32>
    %261 = arith.addf %259, %260 : vector<4x256xf32>
    %262 = arith.select %6, %257, %261 : vector<4x256xi1>, vector<4x256xf32>
    %263 = vector.extract_strided_slice %262 {offsets = [0, 0], sizes = [4, 64], strides = [1, 1]} : vector<4x256xf32> to vector<4x64xf32>
    %264 = vector.extract_strided_slice %262 {offsets = [0, 64], sizes = [4, 64], strides = [1, 1]} : vector<4x256xf32> to vector<4x64xf32>
    %265 = vector.extract_strided_slice %262 {offsets = [0, 128], sizes = [4, 64], strides = [1, 1]} : vector<4x256xf32> to vector<4x64xf32>
    %266 = vector.extract_strided_slice %262 {offsets = [0, 192], sizes = [4, 64], strides = [1, 1]} : vector<4x256xf32> to vector<4x64xf32>
    %267 = arith.mulf %264, %233 : vector<4x64xf32>
    %268 = arith.mulf %263, %265 : vector<4x64xf32>
    %269 = arith.addf %267, %268 : vector<4x64xf32>
    %270 = math.tanh %269 : vector<4x64xf32>
    %271 = arith.mulf %266, %270 : vector<4x64xf32>
    %c6_i32_52 = arith.constant 6 : i32
    %272 = vector.broadcast %c6_i32_52 : i32 to vector<1x8xi32>
    %273 = arith.cmpi eq, %7, %272 : vector<1x8xi32>
    %274 = vector.extract_strided_slice %271 {offsets = [3, 0], sizes = [1, 1], strides = [1, 1]} : vector<4x64xf32> to vector<1x1xf32>
    %cst_53 = arith.constant 0.000000e+00 : f32
    %275 = vector.shape_cast %274 : vector<1x1xf32> to vector<1x1xf32>
    %276 = vector.broadcast %275 : vector<1x1xf32> to vector<1x8xf32>
    %277 = vector.broadcast %cst_53 : f32 to vector<1x8xf32>
    %278 = arith.select %273, %276, %277 : vector<1x8xi1>, vector<1x8xf32>
    %279 = arith.addf %251, %278 : vector<1x8xf32>
    %c1_i32_54 = arith.constant 1 : i32
    %280 = vector.broadcast %c1_i32_54 : i32 to vector<1x8xi32>
    %281 = arith.cmpi eq, %7, %280 : vector<1x8xi32>
    %282 = vector.extract_strided_slice %271 {offsets = [0, 63], sizes = [1, 1], strides = [1, 1]} : vector<4x64xf32> to vector<1x1xf32>
    %cst_55 = arith.constant 0.000000e+00 : f32
    %283 = vector.shape_cast %282 : vector<1x1xf32> to vector<1x1xf32>
    %284 = vector.broadcast %283 : vector<1x1xf32> to vector<1x8xf32>
    %285 = vector.broadcast %cst_55 : f32 to vector<1x8xf32>
    %286 = arith.select %281, %284, %285 : vector<1x8xi1>, vector<1x8xf32>
    %287 = arith.addf %279, %286 : vector<1x8xf32>
    %288 = vector.extract_strided_slice %14 {offsets = [28, 0], sizes = [4, 256], strides = [1, 1]} : vector<32x256xf32> to vector<4x256xf32>
    %289 = vector.extract_strided_slice %14 {offsets = [0, 0], sizes = [4, 256], strides = [1, 1]} : vector<32x256xf32> to vector<4x256xf32>
    %290 = arith.select %32, %288, %289 : vector<4x256xi1>, vector<4x256xf32>
    %cst_56 = arith.constant dense<0.000000e+00> : vector<4x256xf32>
    %291 = tpu.matmul %271, %0, %cst_56 {dimension_numbers = #tpu.dot_dimension_numbers<[1], [0], [0], [1], [0, 0, 1, 1], [], []>} : vector<4x64xf32>, vector<64x256xf32>, vector<4x256xf32> -> vector<4x256xf32>
    %292 = arith.addf %290, %291 : vector<4x256xf32>
    %293 = math.tanh %292 : vector<4x256xf32>
    %cst_57 = arith.constant 5.000000e-01 : f32
    %294 = vector.broadcast %cst_57 : f32 to vector<4x256xf32>
    %295 = arith.mulf %294, %293 : vector<4x256xf32>
    %cst_58 = arith.constant 5.000000e-01 : f32
    %296 = vector.broadcast %cst_58 : f32 to vector<4x256xf32>
    %297 = arith.addf %295, %296 : vector<4x256xf32>
    %298 = arith.select %6, %293, %297 : vector<4x256xi1>, vector<4x256xf32>
    %299 = vector.extract_strided_slice %298 {offsets = [0, 0], sizes = [4, 64], strides = [1, 1]} : vector<4x256xf32> to vector<4x64xf32>
    %300 = vector.extract_strided_slice %298 {offsets = [0, 64], sizes = [4, 64], strides = [1, 1]} : vector<4x256xf32> to vector<4x64xf32>
    %301 = vector.extract_strided_slice %298 {offsets = [0, 128], sizes = [4, 64], strides = [1, 1]} : vector<4x256xf32> to vector<4x64xf32>
    %302 = vector.extract_strided_slice %298 {offsets = [0, 192], sizes = [4, 64], strides = [1, 1]} : vector<4x256xf32> to vector<4x64xf32>
    %303 = arith.mulf %300, %269 : vector<4x64xf32>
    %304 = arith.mulf %299, %301 : vector<4x64xf32>
    %305 = arith.addf %303, %304 : vector<4x64xf32>
    %306 = math.tanh %305 : vector<4x64xf32>
    %307 = arith.mulf %302, %306 : vector<4x64xf32>
    %c7_i32_59 = arith.constant 7 : i32
    %308 = vector.broadcast %c7_i32_59 : i32 to vector<1x8xi32>
    %309 = arith.cmpi eq, %7, %308 : vector<1x8xi32>
    %310 = vector.extract_strided_slice %307 {offsets = [3, 0], sizes = [1, 1], strides = [1, 1]} : vector<4x64xf32> to vector<1x1xf32>
    %cst_60 = arith.constant 0.000000e+00 : f32
    %311 = vector.shape_cast %310 : vector<1x1xf32> to vector<1x1xf32>
    %312 = vector.broadcast %311 : vector<1x1xf32> to vector<1x8xf32>
    %313 = vector.broadcast %cst_60 : f32 to vector<1x8xf32>
    %314 = arith.select %309, %312, %313 : vector<1x8xi1>, vector<1x8xf32>
    %315 = arith.addf %287, %314 : vector<1x8xf32>
    %c0_i32_61 = arith.constant 0 : i32
    %316 = vector.broadcast %c0_i32_61 : i32 to vector<1x8xi32>
    %317 = arith.cmpi eq, %7, %316 : vector<1x8xi32>
    %318 = vector.extract_strided_slice %307 {offsets = [0, 63], sizes = [1, 1], strides = [1, 1]} : vector<4x64xf32> to vector<1x1xf32>
    %cst_62 = arith.constant 0.000000e+00 : f32
    %319 = vector.shape_cast %318 : vector<1x1xf32> to vector<1x1xf32>
    %320 = vector.broadcast %319 : vector<1x1xf32> to vector<1x8xf32>
    %321 = vector.broadcast %cst_62 : f32 to vector<1x8xf32>
    %322 = arith.select %317, %320, %321 : vector<1x8xi1>, vector<1x8xf32>
    %323 = arith.addf %315, %322 : vector<1x8xf32>
    %cst_63 = arith.constant 5.000000e-01 : f32
    %324 = vector.broadcast %cst_63 : f32 to vector<1x8xf32>
    %325 = arith.mulf %323, %324 : vector<1x8xf32>
    %c0_64 = arith.constant 0 : index
    %c0_65 = arith.constant 0 : index
    %326 = vector.load %arg4[%c0_64, %c0_65] : memref<1x1xf32, #tpu.memory_space<vmem>>, vector<1x1xf32>
    %327 = vector.extract %326[0, 0] : f32 from vector<1x1xf32>
    %328 = vector.broadcast %327 : f32 to vector<1x8xf32>
    %329 = arith.mulf %325, %328 : vector<1x8xf32>
    %c0_66 = arith.constant 0 : index
    %c0_67 = arith.constant 0 : index
    %330 = vector.load %arg5[%c0_66, %c0_67] : memref<1x1xf32, #tpu.memory_space<vmem>>, vector<1x1xf32>
    %331 = vector.extract %330[0, 0] : f32 from vector<1x1xf32>
    %332 = vector.broadcast %331 : f32 to vector<1x8xf32>
    %333 = arith.addf %329, %332 : vector<1x8xf32>
    %c0_68 = arith.constant 0 : index
    %c0_69 = arith.constant 0 : index
    %334 = vector.load %arg6[%c0_68, %c0_69] : memref<1x8xf32, #tpu.memory_space<vmem>>, vector<1x8xf32>
    tpu.vector_store %arg6[%c0_68, %c0_69], %333 {strides = array<i32>} : memref<1x8xf32, #tpu.memory_space<vmem>>, vector<1x8xf32>,
    return
  }
}

</mosaic_0001>

<llo_original>
// kernel: tpu_custom_call.1
$region0: #{tpu_custom_call.1}
  #allocation0 [shape = 'u32[]', space=smem, size = 0x4, offset = 0x4, fixed_abs, tag = 'smem constant byte address 0x4 - core index']
  #allocation1 [shape = 'u32[144,128]{1,0:T(1,128)}', space=vmem, size = 0x12000, scoped, tag = 'internal scratch']
  #allocation2 [shape = 'f32[1,1]{1,0:T(1,128)S(1)}', space=vmem, size = 0x200, scoped, tag = 'scoped memory for tpu_custom_call.1']
  #allocation3 [shape = 'f32[1,1]{1,0:T(1,128)S(1)}', space=vmem, size = 0x200, scoped, tag = 'scoped memory for tpu_custom_call.1']
  %s0 = inlined_call_operand.vmem [shape: f32[32,16], index: 0, kind: input, shape index: {}]
  %s1 = inlined_call_operand.vmem [shape: f32[16,256], index: 1, kind: input, shape index: {}]
  %s2 = inlined_call_operand.hbm [shape: f32[64,256], index: 2, kind: input, shape index: {}]
  %s3 = inlined_call_operand.vmem [shape: f32[1,256], index: 3, kind: input, shape index: {}]
  %s4 = inlined_call_operand.<no memory space> [shape: f32[1,1], index: 4, kind: input, shape index: {}]
  %s5 = inlined_call_operand.<no memory space> [shape: f32[1,1], index: 5, kind: input, shape index: {}]
  %s6 = inlined_call_operand.hbm [shape: f32[1,8], index: 6, kind: output, shape index: {}]
  %s7 = sld [smem:[#allocation0]]
  $region38: #{tpu_custom_call.1} parent=0
    _
  %s9 = ssub.s32 1, %s7
  %s10 = scalar_select 0, %s9, %s7
  %v11 = vstv %s4
  %12 = vst [vmem:[#allocation2] sm:$0x1] %v11
  %v13 = vstv %s5
  %14 = vst [vmem:[#allocation3] sm:$0x1] %v13
  $region1: #{tpu_custom_call.1} parent=0
    #allocation4 [shape = 'u8[65536]{0}', space=vmem, size = 0x10000, scoped, tag = 'input window, operand 2, single buffered']
    #allocation5 [shape = 's32[1]{0}', space=sflag, size = 0x4, scoped, tag = 'scoped memory for tpu_custom_call.1']
    #allocation6 [shape = 's32[1]{0}', space=sflag, size = 0x4, scoped, tag = 'scoped memory for tpu_custom_call.1']
    #allocation7 [shape = 'u8[512]{0}', space=vmem, size = 0x400, scoped, tag = 'output window, operand 0, single buffered']
    %15 = vsyncpa [#allocation5], 0
    %16 = vsyncpa [#allocation6], 0
    // Predicated region
    $region2: #{tpu_custom_call.1} parent=1 // pred_check
      _
    $region3: #{tpu_custom_call.1} parent=1 // pred_check_branch
      %18 = sbr.rel (0) target = $region5
    $region4: #{tpu_custom_call.1} parent=1 // pred_region
      _
    $region5: #{tpu_custom_call.1} parent=1 // pred_fallthru
      _
    // Predicated region
    $region6: #{tpu_custom_call.1} parent=1 // pred_check
      _
    $region7: #{tpu_custom_call.1} parent=1 // pred_check_branch
      %20 = sbr.rel (0) target = $region9
    $region8: #{tpu_custom_call.1} parent=1 // pred_region
      _
    $region9: #{tpu_custom_call.1} parent=1 // pred_fallthru
      _
    // Predicated region
    $region10: #{tpu_custom_call.1} parent=1 // pred_check
      _
    $region11: #{tpu_custom_call.1} parent=1 // pred_check_branch
      %22 = sbr.rel (0) target = $region13
    $region12: #{tpu_custom_call.1} parent=1 // pred_region
      %s24 = ssub.s32 2048, 2048
      %25 = vsyncadd [#allocation5], %s24
      %s26 = sshll.u32 [#allocation4], 4
      %s27 = int_to_ptr.vmem [resolvable:$true] %s26
      %32 = dma.hbm_to_vmem [thread:$0]  %s2, 2048, %s27, [#allocation5], 256, 256, 16
    $region13: #{tpu_custom_call.1} parent=1 // pred_fallthru
      _
    // Predicated region
    $region14: #{tpu_custom_call.1} parent=1 // pred_check
      _
    $region15: #{tpu_custom_call.1} parent=1 // pred_check_branch
      %34 = sbr.rel (0) target = $region17
    $region16: #{tpu_custom_call.1} parent=1 // pred_region
      _
    $region17: #{tpu_custom_call.1} parent=1 // pred_fallthru
      _
    // Predicated region
    $region18: #{tpu_custom_call.1} parent=1 // pred_check
      _
    $region19: #{tpu_custom_call.1} parent=1 // pred_check_branch
      %36 = sbr.rel (0) target = $region21
    $region20: #{tpu_custom_call.1} parent=1 // pred_region
      _
    $region21: #{tpu_custom_call.1} parent=1 // pred_fallthru
      _
    // Predicated region
    $region22: #{tpu_custom_call.1} parent=1 // pred_check
      _
    $region23: #{tpu_custom_call.1} parent=1 // pred_check_branch
      %38 = sbr.rel (0) target = $region25
    $region24: #{tpu_custom_call.1} parent=1 // pred_region
      _
    $region25: #{tpu_custom_call.1} parent=1 // pred_fallthru
      _
    // Predicated region
    $region26: #{tpu_custom_call.1} parent=1 // pred_check
      _
    $region27: #{tpu_custom_call.1} parent=1 // pred_check_branch
      %40 = sbr.rel (0) target = $region29
    $region28: #{tpu_custom_call.1} parent=1 // pred_region
      %41 = dma.done [#allocation5], 2048
    $region29: #{tpu_custom_call.1} parent=1 // pred_fallthru
      _
    %v42 = vld [vmem:[#allocation4] sm:$0xff]
    %v43 = vld [vmem:[#allocation4 + $0x8] sm:$0xff]
    %v44 = vld [vmem:[#allocation4 + $0x10] sm:$0xff]
    %v45 = vld [vmem:[#allocation4 + $0x18] sm:$0xff]
    %v46 = vld [vmem:[#allocation4 + $0x20] sm:$0xff]
    %v47 = vld [vmem:[#allocation4 + $0x28] sm:$0xff]
    %v48 = vld [vmem:[#allocation4 + $0x30] sm:$0xff]
    %v49 = vld [vmem:[#allocation4 + $0x38] sm:$0xff]
    %v50 = vld [vmem:[#allocation4 + $0x40] sm:$0xff]
    %v51 = vld [vmem:[#allocation4 + $0x48] sm:$0xff]
    %v52 = vld [vmem:[#allocation4 + $0x50] sm:$0xff]
    %v53 = vld [vmem:[#allocation4 + $0x58] sm:$0xff]
    %v54 = vld [vmem:[#allocation4 + $0x60] sm:$0xff]
    %v55 = vld [vmem:[#allocation4 + $0x68] sm:$0xff]
    %v56 = vld [vmem:[#allocation4 + $0x70] sm:$0xff]
    %v57 = vld [vmem:[#allocation4 + $0x78] sm:$0xff]
    %v58 = vlaneseq
    %v59 = vand.u32 %v58, 127
    %v60 = vadd.s32 %v59, 128
    %vm61 = vcmp.ge.s32.totalorder %v59, 128
    %vm62 = vcmp.ge.s32.totalorder %v60, 128
    %vm63 = vcmp.lt.s32.totalorder %v59, 192
    %vm64 = vcmp.lt.s32.totalorder %v60, 192
    %vm65 = vmand %vm61, %vm63
    %vm66 = vmand %vm62, %vm64
    %v67 = vld [vmem:[%s0] sm:$0xff]
    %v68 = vld [vmem:[%s0 + $0x8] sm:$0xff]
    %v69 = vld [vmem:[%s0 + $0x10] sm:$0xff]
    %v70 = vld [vmem:[%s0 + $0x18] sm:$0xff]
    %v71 = vld [vmem:[%s1] sm:$0xff]
    %v72 = vld [vmem:[%s1 + $0x8] sm:$0xff]
    %v73 = vld [vmem:[%s1 + $0x10] sm:$0xff]
    %v74 = vld [vmem:[%s1 + $0x18] sm:$0xff]
    %v75 = vld [vmem:[%s3] sm:$0x3]
    %v77 = vlaneseq
    %v78 = vshrl.u32 %v77, 7
    %v79 = vsub.s32 0, %v78
    %v80 = vrot.slane %v75, %v79
    %v81 = vlaneseq
    %v82 = vshrl.u32 %v81, 7
    %v83 = vsub.s32 1, %v82
    %v84 = vrot.slane %v75, %v83
    %vm87 = vcmask 130048
    %v89 = vsel %vm87, %v67, 0
    %v92 = vsel %vm87, %v68, 0
    %v95 = vsel %vm87, %v69, 0
    %v98 = vsel %vm87, %v70, 0
    %100 = vmatprep.subr.mxu0 0.0
    %101 = vmatpush1.msra.mxu0 0.0
    %102 = vmatprep.subr.mxu0 0.0
    %103 = vmatpush1.msra.mxu0 0.0
    %104 = vmatprep.subr.mxu0 0.0
    %105 = vmatpush1.msra.mxu0 0.0
    %106 = vmatprep.subr.mxu0 0.0
    %107 = vmatpush1.msra.mxu0 0.0
    %108 = vmatprep.subr.mxu0 0.0
    %109 = vmatpush1.msra.mxu0 0.0
    %110 = vmatprep.subr.mxu0 0.0
    %111 = vmatpush1.msra.mxu0 0.0
    %112 = vmatprep.subr.mxu0 0.0
    %113 = vmatpush1.msra.mxu0 0.0
    %114 = vmatprep.subr.mxu0 0.0
    %115 = vmatpush1.msra.mxu0 0.0
    %116 = vmatprep.subr.mxu0 0.0
    %117 = vmatpush1.msra.mxu0 0.0
    %118 = vmatprep.subr.mxu0 0.0
    %119 = vmatpush1.msra.mxu0 0.0
    %120 = vmatprep.subr.mxu0 0.0
    %121 = vmatpush1.msra.mxu0 0.0
    %122 = vmatprep.subr.mxu0 0.0
    %123 = vmatpush1.msra.mxu0 0.0
    %124 = vmatprep.subr.mxu0 0.0
    %125 = vmatpush1.msra.mxu0 0.0
    %126 = vmatprep.subr.mxu0 0.0
    %127 = vmatpush1.msra.mxu0 0.0
    %128 = vmatprep.subr.mxu0 %v74
    %129 = vmatpush1.msra.mxu0 %v73
    %130 = vmatprep.subr.mxu0 %v72
    %131 = vmatpush1.msra.mxu0 %v71
    %132 = vmatprep.subr.mxu0 0.0
    %133 = vmatpush2.msra.mxu0 0.0
    %134 = vmatprep.subr.mxu0 0.0
    %135 = vmatpush2.msra.mxu0 0.0
    %136 = vmatprep.subr.mxu0 0.0
    %137 = vmatpush2.msra.mxu0 0.0
    %138 = vmatprep.subr.mxu0 0.0
    %139 = vmatpush2.msra.mxu0 0.0
    %140 = vmatprep.subr.mxu0 0.0
    %141 = vmatpush2.msra.mxu0 0.0
    %142 = vmatprep.subr.mxu0 0.0
    %143 = vmatpush2.msra.mxu0 0.0
    %144 = vmatprep.subr.mxu0 0.0
    %145 = vmatpush2.msra.mxu0 0.0
    %146 = vmatprep.subr.mxu0 0.0
    %147 = vmatpush2.msra.mxu0 0.0
    %148 = vmatprep.subr.mxu0 0.0
    %149 = vmatpush2.msra.mxu0 0.0
    %150 = vmatprep.subr.mxu0 0.0
    %151 = vmatpush2.msra.mxu0 0.0
    %152 = vmatprep.subr.mxu0 0.0
    %153 = vmatpush2.msra.mxu0 0.0
    %154 = vmatprep.subr.mxu0 0.0
    %155 = vmatpush2.msra.mxu0 0.0
    %156 = vmatprep.subr.mxu0 0.0
    %157 = vmatpush2.msra.mxu0 0.0
    %158 = vmatprep.subr.mxu0 0.0
    %159 = vmatpush2.msra.mxu0 0.0
    %160 = vmatprep.subr.mxu0 0.0
    %161 = vmatpush2.msra.mxu0 0.0
    %162 = vmatprep.subr.mxu0 0.0
    %163 = vmatpush2.msra.mxu0 0.0
    %164 = vmatprep.mubr.f32.mxu0 0.0
    %165 = vmatmul.mubr.f32.gmra.mxu0 %v89
    %v166 = vpop.f32.mrf.mxu0
    %v167 = vadd.f32 %v80, %v166
    %v168 = vpop.f32.mrf.mxu0
    %v169 = vadd.f32 %v84, %v168
    %170 = vmatprep.mubr.f32.mxu0 0.0
    %171 = vmatmul.mubr.f32.gmra.mxu0 %v92
    %v172 = vpop.f32.mrf.mxu0
    %v173 = vadd.f32 %v80, %v172
    %v174 = vpop.f32.mrf.mxu0
    %v175 = vadd.f32 %v84, %v174
    %176 = vmatprep.mubr.f32.mxu0 0.0
    %177 = vmatmul.mubr.f32.gmra.mxu0 %v95
    %v178 = vpop.f32.mrf.mxu0
    %v179 = vadd.f32 %v80, %v178
    %v180 = vpop.f32.mrf.mxu0
    %v181 = vadd.f32 %v84, %v180
    %182 = vmatprep.mubr.f32.mxu0 0.0
    %183 = vmatmul.mubr.f32.gmra.mxu0 %v98
    %v184 = vpop.f32.mrf.mxu0
    %v185 = vadd.f32 %v80, %v184
    %v186 = vpop.f32.mrf.mxu0
    %v187 = vadd.f32 %v84, %v186
    %188 = vdwg.mxu0
    %vm189 = vcmp.lt.s32.totalorder %v59, 0
    %v190 = vsub.s32 0, %v59
    %v191 = vsel %vm189, %v190, %v59
    %v192 = vshrl.u32 %v191, 6
    %v193 = vand.u32 %v191, 63
    %v194 = vsub.s32 0, %v193
    %v195 = vsel %vm189, %v194, %v193
    %vm196 = vcmp.lt.s32.totalorder %v60, 0
    %v197 = vsub.s32 0, %v60
    %v198 = vsel %vm196, %v197, %v60
    %v199 = vshrl.u32 %v198, 6
    %v200 = vand.u32 %v198, 63
    %v201 = vsub.s32 0, %v200
    %v202 = vsel %vm196, %v201, %v200
    %vm203 = vcmp.ne.s32.totalorder %v195, 0
    %vm204 = vcmp.ne.s32.totalorder %v202, 0
    %vm205 = vcmp.lt.s32.totalorder %v195, 0
    %vm206 = vcmp.lt.s32.totalorder %v202, 0
    %vm207 = vmand %vm205, %vm203
    %vm208 = vmand %vm206, %vm204
    %v209 = vadd.s32 %v195, 64
    %v210 = vadd.s32 %v202, 64
    %v211 = vsel %vm207, %v209, %v195
    %v212 = vsel %vm208, %v210, %v202
    %vm213 = vcmp.lt.s32.totalorder %v211, 32
    %vm214 = vcmp.lt.s32.totalorder %v212, 32
    %v217 = vrot.slane %v185, 4
    %v218 = vrot.slane %v187, 4
    %v221 = vsel %vm213, %v167, %v217
    %v222 = vsel %vm214, %v169, %v218
    %vm223 = vcmask 523264
    %v225 = vsel %vm223, 0.0, 0
    %227 = vmatprep.subr.mxu0 0.0
    %228 = vmatpush1.msra.mxu0 0.0
    %229 = vmatprep.subr.mxu0 0.0
    %230 = vmatpush1.msra.mxu0 0.0
    %231 = vmatprep.subr.mxu0 0.0
    %232 = vmatpush1.msra.mxu0 0.0
    %233 = vmatprep.subr.mxu0 0.0
    %234 = vmatpush1.msra.mxu0 0.0
    %235 = vmatprep.subr.mxu0 0.0
    %236 = vmatpush1.msra.mxu0 0.0
    %237 = vmatprep.subr.mxu0 0.0
    %238 = vmatpush1.msra.mxu0 0.0
    %239 = vmatprep.subr.mxu0 0.0
    %240 = vmatpush1.msra.mxu0 0.0
    %241 = vmatprep.subr.mxu0 0.0
    %242 = vmatpush1.msra.mxu0 0.0
    %243 = vmatprep.subr.mxu0 %v57
    %244 = vmatpush1.msra.mxu0 %v56
    %245 = vmatprep.subr.mxu0 %v55
    %246 = vmatpush1.msra.mxu0 %v54
    %247 = vmatprep.subr.mxu0 %v53
    %248 = vmatpush1.msra.mxu0 %v52
    %249 = vmatprep.subr.mxu0 %v51
    %250 = vmatpush1.msra.mxu0 %v50
    %251 = vmatprep.subr.mxu0 %v49
    %252 = vmatpush1.msra.mxu0 %v48
    %253 = vmatprep.subr.mxu0 %v47
    %254 = vmatpush1.msra.mxu0 %v46
    %255 = vmatprep.subr.mxu0 %v45
    %256 = vmatpush1.msra.mxu0 %v44
    %257 = vmatprep.subr.mxu0 %v43
    %258 = vmatpush1.msra.mxu0 %v42
    %259 = vmatprep.subr.mxu0 0.0
    %260 = vmatpush2.msra.mxu0 0.0
    %261 = vmatprep.subr.mxu0 0.0
    %262 = vmatpush2.msra.mxu0 0.0
    %263 = vmatprep.subr.mxu0 0.0
    %264 = vmatpush2.msra.mxu0 0.0
    %265 = vmatprep.subr.mxu0 0.0
    %266 = vmatpush2.msra.mxu0 0.0
    %267 = vmatprep.subr.mxu0 0.0
    %268 = vmatpush2.msra.mxu0 0.0
    %269 = vmatprep.subr.mxu0 0.0
    %270 = vmatpush2.msra.mxu0 0.0
    %271 = vmatprep.subr.mxu0 0.0
    %272 = vmatpush2.msra.mxu0 0.0
    %273 = vmatprep.subr.mxu0 0.0
    %274 = vmatpush2.msra.mxu0 0.0
    %275 = vmatprep.subr.mxu0 0.0
    %276 = vmatpush2.msra.mxu0 0.0
    %277 = vmatprep.subr.mxu0 0.0
    %278 = vmatpush2.msra.mxu0 0.0
    %279 = vmatprep.subr.mxu0 0.0
    %280 = vmatpush2.msra.mxu0 0.0
    %281 = vmatprep.subr.mxu0 0.0
    %282 = vmatpush2.msra.mxu0 0.0
    %283 = vmatprep.subr.mxu0 0.0
    %284 = vmatpush2.msra.mxu0 0.0
    %285 = vmatprep.subr.mxu0 0.0
    %286 = vmatpush2.msra.mxu0 0.0
    %287 = vmatprep.subr.mxu0 0.0
    %288 = vmatpush2.msra.mxu0 0.0
    %289 = vmatprep.subr.mxu0 0.0
    %290 = vmatpush2.msra.mxu0 0.0
    %291 = vmatprep.mubr.f32.mxu0 0.0
    %292 = vmatmul.mubr.f32.gmra.mxu0 %v225
    %v293 = vpop.f32.mrf.mxu0
    %v294 = vadd.f32 0.0, %v293
    %v295 = vpop.f32.mrf.mxu0
    %v296 = vadd.f32 0.0, %v295
    %297 = vdwg.mxu0
    %v298 = vadd.f32 %v221, %v294
    %v299 = vadd.f32 %v222, %v296
    %v300 = vtanh.pop %v298
    %v301 = vtanh.pop %v299
    %v302 = vmul.f32 %v300, 0.5
    %v303 = vmul.f32 %v301, 0.5
    %v304 = vadd.f32 %v302, 0.5
    %v305 = vadd.f32 %v303, 0.5
    %v306 = vsel %vm65, %v300, %v304
    %v307 = vsel %vm66, %v301, %v305
    %v308 = vmul.f32 %v306, 0.0
    %v309 = vmul.f32 %v306, %v307
    %311 = vrot.lane.b32.xlu0 %v309, 64
    %v312 = vpop.permute.xlu0 %311
    %v314 = vadd.f32 %v308, %v312
    %v315 = vtanh.pop %v314
    %v316 = vmul.f32 %v307, %v315
    %vm317 = vcmp.eq.s32.totalorder %v59, 0
    %319 = vset.pattern.permute.xlu0 64
    %320 = vperm.xlu0 %319, %v316
    %v321 = vpop.permute.xlu0 %320
    %v323 = vsel %vm317, %v321, 0.0
    %v324 = vadd.f32 %v323, 0.0
    %vm325 = vcmp.eq.s32.totalorder %v59, 7
    %326 = vset.pattern.permute.xlu0 127
    %327 = vperm.xlu0 %326, %v316
    %v328 = vpop.permute.xlu0 %327
    %v330 = vsel %vm325, %v328, 0.0
    %v332 = vrot.slane %v330, 5
    %v334 = vadd.f32 %v324, %v332
    %335 = vrot.lane.b32.xlu0 %v316, 64
    %v336 = vpop.permute.xlu0 %335
    %v337 = vsel %vm223, %v336, 0
    %339 = vmatprep.subr.mxu0 0.0
    %340 = vmatpush1.msra.mxu0 0.0
    %341 = vmatprep.subr.mxu0 0.0
    %342 = vmatpush1.msra.mxu0 0.0
    %343 = vmatprep.subr.mxu0 0.0
    %344 = vmatpush1.msra.mxu0 0.0
    %345 = vmatprep.subr.mxu0 0.0
    %346 = vmatpush1.msra.mxu0 0.0
    %347 = vmatprep.subr.mxu0 0.0
    %348 = vmatpush1.msra.mxu0 0.0
    %349 = vmatprep.subr.mxu0 0.0
    %350 = vmatpush1.msra.mxu0 0.0
    %351 = vmatprep.subr.mxu0 0.0
    %352 = vmatpush1.msra.mxu0 0.0
    %353 = vmatprep.subr.mxu0 0.0
    %354 = vmatpush1.msra.mxu0 0.0
    %355 = vmatprep.subr.mxu0 %v57
    %356 = vmatpush1.msra.mxu0 %v56
    %357 = vmatprep.subr.mxu0 %v55
    %358 = vmatpush1.msra.mxu0 %v54
    %359 = vmatprep.subr.mxu0 %v53
    %360 = vmatpush1.msra.mxu0 %v52
    %361 = vmatprep.subr.mxu0 %v51
    %362 = vmatpush1.msra.mxu0 %v50
    %363 = vmatprep.subr.mxu0 %v49
    %364 = vmatpush1.msra.mxu0 %v48
    %365 = vmatprep.subr.mxu0 %v47
    %366 = vmatpush1.msra.mxu0 %v46
    %367 = vmatprep.subr.mxu0 %v45
    %368 = vmatpush1.msra.mxu0 %v44
    %369 = vmatprep.subr.mxu0 %v43
    %370 = vmatpush1.msra.mxu0 %v42
    %371 = vmatprep.subr.mxu0 0.0
    %372 = vmatpush2.msra.mxu0 0.0
    %373 = vmatprep.subr.mxu0 0.0
    %374 = vmatpush2.msra.mxu0 0.0
    %375 = vmatprep.subr.mxu0 0.0
    %376 = vmatpush2.msra.mxu0 0.0
    %377 = vmatprep.subr.mxu0 0.0
    %378 = vmatpush2.msra.mxu0 0.0
    %379 = vmatprep.subr.mxu0 0.0
    %380 = vmatpush2.msra.mxu0 0.0
    %381 = vmatprep.subr.mxu0 0.0
    %382 = vmatpush2.msra.mxu0 0.0
    %383 = vmatprep.subr.mxu0 0.0
    %384 = vmatpush2.msra.mxu0 0.0
    %385 = vmatprep.subr.mxu0 0.0
    %386 = vmatpush2.msra.mxu0 0.0
    %387 = vmatprep.subr.mxu0 0.0
    %388 = vmatpush2.msra.mxu0 0.0
    %389 = vmatprep.subr.mxu0 0.0
    %390 = vmatpush2.msra.mxu0 0.0
    %391 = vmatprep.subr.mxu0 0.0
    %392 = vmatpush2.msra.mxu0 0.0
    %393 = vmatprep.subr.mxu0 0.0
    %394 = vmatpush2.msra.mxu0 0.0
    %395 = vmatprep.subr.mxu0 0.0
    %396 = vmatpush2.msra.mxu0 0.0
    %397 = vmatprep.subr.mxu0 0.0
    %398 = vmatpush2.msra.mxu0 0.0
    %399 = vmatprep.subr.mxu0 0.0
    %400 = vmatpush2.msra.mxu0 0.0
    %401 = vmatprep.subr.mxu0 0.0
    %402 = vmatpush2.msra.mxu0 0.0
    %403 = vmatprep.mubr.f32.mxu0 0.0
    %404 = vmatmul.mubr.f32.gmra.mxu0 %v337
    %v405 = vpop.f32.mrf.mxu0
    %v406 = vadd.f32 0.0, %v405
    %v407 = vpop.f32.mrf.mxu0
    %v408 = vadd.f32 0.0, %v407
    %409 = vdwg.mxu0
    %v412 = vrot.slane %v406, 4
    %v413 = vrot.slane %v408, 4
    %v416 = vadd.f32 %v221, %v412
    %v417 = vadd.f32 %v222, %v413
    %v418 = vtanh.pop %v416
    %v419 = vtanh.pop %v417
    %v420 = vmul.f32 %v418, 0.5
    %v421 = vmul.f32 %v419, 0.5
    %v422 = vadd.f32 %v420, 0.5
    %v423 = vadd.f32 %v421, 0.5
    %v424 = vsel %vm65, %v418, %v422
    %v425 = vsel %vm66, %v419, %v423
    %v427 = vrot.slane %v314, 4
    %v429 = vmul.f32 %v424, %v427
    %v430 = vmul.f32 %v424, %v425
    %432 = vrot.lane.b32.xlu0 %v430, 64
    %v433 = vpop.permute.xlu0 %432
    %v435 = vadd.f32 %v429, %v433
    %v436 = vtanh.pop %v435
    %v437 = vmul.f32 %v425, %v436
    %vm438 = vcmp.eq.s32.totalorder %v59, 1
    %440 = vset.pattern.permute.xlu0 64
    %441 = vperm.xlu0 %440, %v437
    %v442 = vpop.permute.xlu0 %441
    %v444 = vsel %vm438, %v442, 0.0
    %v446 = vrot.slane %v444, 4
    %v448 = vadd.f32 %v334, %v446
    %vm449 = vcmp.eq.s32.totalorder %v59, 6
    %450 = vset.pattern.permute.xlu0 127
    %451 = vperm.xlu0 %450, %v437
    %v452 = vpop.permute.xlu0 %451
    %v454 = vsel %vm449, %v452, 0.0
    %v456 = vrot.slane %v454, 1
    %v458 = vadd.f32 %v448, %v456
    %v461 = vrot.slane %v179, 4
    %v462 = vrot.slane %v181, 4
    %v465 = vsel %vm213, %v173, %v461
    %v466 = vsel %vm214, %v175, %v462
    %v467 = vrot.slane %v437, 4
    %468 = vrot.lane.b32.xlu0 %v467, 64
    %v469 = vpop.permute.xlu0 %468
    %v470 = vsel %vm223, %v469, 0
    %472 = vmatprep.subr.mxu0 0.0
    %473 = vmatpush1.msra.mxu0 0.0
    %474 = vmatprep.subr.mxu0 0.0
    %475 = vmatpush1.msra.mxu0 0.0
    %476 = vmatprep.subr.mxu0 0.0
    %477 = vmatpush1.msra.mxu0 0.0
    %478 = vmatprep.subr.mxu0 0.0
    %479 = vmatpush1.msra.mxu0 0.0
    %480 = vmatprep.subr.mxu0 0.0
    %481 = vmatpush1.msra.mxu0 0.0
    %482 = vmatprep.subr.mxu0 0.0
    %483 = vmatpush1.msra.mxu0 0.0
    %484 = vmatprep.subr.mxu0 0.0
    %485 = vmatpush1.msra.mxu0 0.0
    %486 = vmatprep.subr.mxu0 0.0
    %487 = vmatpush1.msra.mxu0 0.0
    %488 = vmatprep.subr.mxu0 %v57
    %489 = vmatpush1.msra.mxu0 %v56
    %490 = vmatprep.subr.mxu0 %v55
    %491 = vmatpush1.msra.mxu0 %v54
    %492 = vmatprep.subr.mxu0 %v53
    %493 = vmatpush1.msra.mxu0 %v52
    %494 = vmatprep.subr.mxu0 %v51
    %495 = vmatpush1.msra.mxu0 %v50
    %496 = vmatprep.subr.mxu0 %v49
    %497 = vmatpush1.msra.mxu0 %v48
    %498 = vmatprep.subr.mxu0 %v47
    %499 = vmatpush1.msra.mxu0 %v46
    %500 = vmatprep.subr.mxu0 %v45
    %501 = vmatpush1.msra.mxu0 %v44
    %502 = vmatprep.subr.mxu0 %v43
    %503 = vmatpush1.msra.mxu0 %v42
    %504 = vmatprep.subr.mxu0 0.0
    %505 = vmatpush2.msra.mxu0 0.0
    %506 = vmatprep.subr.mxu0 0.0
    %507 = vmatpush2.msra.mxu0 0.0
    %508 = vmatprep.subr.mxu0 0.0
    %509 = vmatpush2.msra.mxu0 0.0
    %510 = vmatprep.subr.mxu0 0.0
    %511 = vmatpush2.msra.mxu0 0.0
    %512 = vmatprep.subr.mxu0 0.0
    %513 = vmatpush2.msra.mxu0 0.0
    %514 = vmatprep.subr.mxu0 0.0
    %515 = vmatpush2.msra.mxu0 0.0
    %516 = vmatprep.subr.mxu0 0.0
    %517 = vmatpush2.msra.mxu0 0.0
    %518 = vmatprep.subr.mxu0 0.0
    %519 = vmatpush2.msra.mxu0 0.0
    %520 = vmatprep.subr.mxu0 0.0
    %521 = vmatpush2.msra.mxu0 0.0
    %522 = vmatprep.subr.mxu0 0.0
    %523 = vmatpush2.msra.mxu0 0.0
    %524 = vmatprep.subr.mxu0 0.0
    %525 = vmatpush2.msra.mxu0 0.0
    %526 = vmatprep.subr.mxu0 0.0
    %527 = vmatpush2.msra.mxu0 0.0
    %528 = vmatprep.subr.mxu0 0.0
    %529 = vmatpush2.msra.mxu0 0.0
    %530 = vmatprep.subr.mxu0 0.0
    %531 = vmatpush2.msra.mxu0 0.0
    %532 = vmatprep.subr.mxu0 0.0
    %533 = vmatpush2.msra.mxu0 0.0
    %534 = vmatprep.subr.mxu0 0.0
    %535 = vmatpush2.msra.mxu0 0.0
    %536 = vmatprep.mubr.f32.mxu0 0.0
    %537 = vmatmul.mubr.f32.gmra.mxu0 %v470
    %v538 = vpop.f32.mrf.mxu0
    %v539 = vadd.f32 0.0, %v538
    %v540 = vpop.f32.mrf.mxu0
    %v541 = vadd.f32 0.0, %v540
    %542 = vdwg.mxu0
    %v543 = vadd.f32 %v465, %v539
    %v544 = vadd.f32 %v466, %v541
    %v545 = vtanh.pop %v543
    %v546 = vtanh.pop %v544
    %v547 = vmul.f32 %v545, 0.5
    %v548 = vmul.f32 %v546, 0.5
    %v549 = vadd.f32 %v547, 0.5
    %v550 = vadd.f32 %v548, 0.5
    %v551 = vsel %vm65, %v545, %v549
    %v552 = vsel %vm66, %v546, %v550
    %v554 = vrot.slane %v435, 4
    %v556 = vmul.f32 %v551, %v554
    %v557 = vmul.f32 %v551, %v552
    %559 = vrot.lane.b32.xlu0 %v557, 64
    %v560 = vpop.permute.xlu0 %559
    %v562 = vadd.f32 %v556, %v560
    %v563 = vtanh.pop %v562
    %v564 = vmul.f32 %v552, %v563
    %vm565 = vcmp.eq.s32.totalorder %v59, 2
    %567 = vset.pattern.permute.xlu0 64
    %568 = vperm.xlu0 %567, %v564
    %v569 = vpop.permute.xlu0 %568
    %v571 = vsel %vm565, %v569, 0.0
    %v572 = vadd.f32 %v458, %v571
    %vm573 = vcmp.eq.s32.totalorder %v59, 5
    %574 = vset.pattern.permute.xlu0 127
    %575 = vperm.xlu0 %574, %v564
    %v576 = vpop.permute.xlu0 %575
    %v578 = vsel %vm573, %v576, 0.0
    %v580 = vrot.slane %v578, 5
    %v582 = vadd.f32 %v572, %v580
    %583 = vrot.lane.b32.xlu0 %v564, 64
    %v584 = vpop.permute.xlu0 %583
    %v585 = vsel %vm223, %v584, 0
    %587 = vmatprep.subr.mxu0 0.0
    %588 = vmatpush1.msra.mxu0 0.0
    %589 = vmatprep.subr.mxu0 0.0
    %590 = vmatpush1.msra.mxu0 0.0
    %591 = vmatprep.subr.mxu0 0.0
    %592 = vmatpush1.msra.mxu0 0.0
    %593 = vmatprep.subr.mxu0 0.0
    %594 = vmatpush1.msra.mxu0 0.0
    %595 = vmatprep.subr.mxu0 0.0
    %596 = vmatpush1.msra.mxu0 0.0
    %597 = vmatprep.subr.mxu0 0.0
    %598 = vmatpush1.msra.mxu0 0.0
    %599 = vmatprep.subr.mxu0 0.0
    %600 = vmatpush1.msra.mxu0 0.0
    %601 = vmatprep.subr.mxu0 0.0
    %602 = vmatpush1.msra.mxu0 0.0
    %603 = vmatprep.subr.mxu0 %v57
    %604 = vmatpush1.msra.mxu0 %v56
    %605 = vmatprep.subr.mxu0 %v55
    %606 = vmatpush1.msra.mxu0 %v54
    %607 = vmatprep.subr.mxu0 %v53
    %608 = vmatpush1.msra.mxu0 %v52
    %609 = vmatprep.subr.mxu0 %v51
    %610 = vmatpush1.msra.mxu0 %v50
    %611 = vmatprep.subr.mxu0 %v49
    %612 = vmatpush1.msra.mxu0 %v48
    %613 = vmatprep.subr.mxu0 %v47
    %614 = vmatpush1.msra.mxu0 %v46
    %615 = vmatprep.subr.mxu0 %v45
    %616 = vmatpush1.msra.mxu0 %v44
    %617 = vmatprep.subr.mxu0 %v43
    %618 = vmatpush1.msra.mxu0 %v42
    %619 = vmatprep.subr.mxu0 0.0
    %620 = vmatpush2.msra.mxu0 0.0
    %621 = vmatprep.subr.mxu0 0.0
    %622 = vmatpush2.msra.mxu0 0.0
    %623 = vmatprep.subr.mxu0 0.0
    %624 = vmatpush2.msra.mxu0 0.0
    %625 = vmatprep.subr.mxu0 0.0
    %626 = vmatpush2.msra.mxu0 0.0
    %627 = vmatprep.subr.mxu0 0.0
    %628 = vmatpush2.msra.mxu0 0.0
    %629 = vmatprep.subr.mxu0 0.0
    %630 = vmatpush2.msra.mxu0 0.0
    %631 = vmatprep.subr.mxu0 0.0
    %632 = vmatpush2.msra.mxu0 0.0
    %633 = vmatprep.subr.mxu0 0.0
    %634 = vmatpush2.msra.mxu0 0.0
    %635 = vmatprep.subr.mxu0 0.0
    %636 = vmatpush2.msra.mxu0 0.0
    %637 = vmatprep.subr.mxu0 0.0
    %638 = vmatpush2.msra.mxu0 0.0
    %639 = vmatprep.subr.mxu0 0.0
    %640 = vmatpush2.msra.mxu0 0.0
    %641 = vmatprep.subr.mxu0 0.0
    %642 = vmatpush2.msra.mxu0 0.0
    %643 = vmatprep.subr.mxu0 0.0
    %644 = vmatpush2.msra.mxu0 0.0
    %645 = vmatprep.subr.mxu0 0.0
    %646 = vmatpush2.msra.mxu0 0.0
    %647 = vmatprep.subr.mxu0 0.0
    %648 = vmatpush2.msra.mxu0 0.0
    %649 = vmatprep.subr.mxu0 0.0
    %650 = vmatpush2.msra.mxu0 0.0
    %651 = vmatprep.mubr.f32.mxu0 0.0
    %652 = vmatmul.mubr.f32.gmra.mxu0 %v585
    %v653 = vpop.f32.mrf.mxu0
    %v654 = vadd.f32 0.0, %v653
    %v655 = vpop.f32.mrf.mxu0
    %v656 = vadd.f32 0.0, %v655
    %657 = vdwg.mxu0
    %v660 = vrot.slane %v654, 4
    %v661 = vrot.slane %v656, 4
    %v664 = vadd.f32 %v465, %v660
    %v665 = vadd.f32 %v466, %v661
    %v666 = vtanh.pop %v664
    %v667 = vtanh.pop %v665
    %v668 = vmul.f32 %v666, 0.5
    %v669 = vmul.f32 %v667, 0.5
    %v670 = vadd.f32 %v668, 0.5
    %v671 = vadd.f32 %v669, 0.5
    %v672 = vsel %vm65, %v666, %v670
    %v673 = vsel %vm66, %v667, %v671
    %v675 = vrot.slane %v562, 4
    %v677 = vmul.f32 %v672, %v675
    %v678 = vmul.f32 %v672, %v673
    %680 = vrot.lane.b32.xlu0 %v678, 64
    %v681 = vpop.permute.xlu0 %680
    %v683 = vadd.f32 %v677, %v681
    %v684 = vtanh.pop %v683
    %v685 = vmul.f32 %v673, %v684
    %vm686 = vcmp.eq.s32.totalorder %v59, 3
    %688 = vset.pattern.permute.xlu0 64
    %689 = vperm.xlu0 %688, %v685
    %v690 = vpop.permute.xlu0 %689
    %v692 = vsel %vm686, %v690, 0.0
    %v694 = vrot.slane %v692, 4
    %v696 = vadd.f32 %v582, %v694
    %vm697 = vcmp.eq.s32.totalorder %v59, 4
    %698 = vset.pattern.permute.xlu0 127
    %699 = vperm.xlu0 %698, %v685
    %v700 = vpop.permute.xlu0 %699
    %v702 = vsel %vm697, %v700, 0.0
    %v704 = vrot.slane %v702, 1
    %v706 = vadd.f32 %v696, %v704
    %v709 = vrot.slane %v173, 4
    %v710 = vrot.slane %v175, 4
    %v713 = vsel %vm213, %v179, %v709
    %v714 = vsel %vm214, %v181, %v710
    %v715 = vrot.slane %v685, 4
    %716 = vrot.lane.b32.xlu0 %v715, 64
    %v717 = vpop.permute.xlu0 %716
    %v718 = vsel %vm223, %v717, 0
    %720 = vmatprep.subr.mxu0 0.0
    %721 = vmatpush1.msra.mxu0 0.0
    %722 = vmatprep.subr.mxu0 0.0
    %723 = vmatpush1.msra.mxu0 0.0
    %724 = vmatprep.subr.mxu0 0.0
    %725 = vmatpush1.msra.mxu0 0.0
    %726 = vmatprep.subr.mxu0 0.0
    %727 = vmatpush1.msra.mxu0 0.0
    %728 = vmatprep.subr.mxu0 0.0
    %729 = vmatpush1.msra.mxu0 0.0
    %730 = vmatprep.subr.mxu0 0.0
    %731 = vmatpush1.msra.mxu0 0.0
    %732 = vmatprep.subr.mxu0 0.0
    %733 = vmatpush1.msra.mxu0 0.0
    %734 = vmatprep.subr.mxu0 0.0
    %735 = vmatpush1.msra.mxu0 0.0
    %736 = vmatprep.subr.mxu0 %v57
    %737 = vmatpush1.msra.mxu0 %v56
    %738 = vmatprep.subr.mxu0 %v55
    %739 = vmatpush1.msra.mxu0 %v54
    %740 = vmatprep.subr.mxu0 %v53
    %741 = vmatpush1.msra.mxu0 %v52
    %742 = vmatprep.subr.mxu0 %v51
    %743 = vmatpush1.msra.mxu0 %v50
    %744 = vmatprep.subr.mxu0 %v49
    %745 = vmatpush1.msra.mxu0 %v48
    %746 = vmatprep.subr.mxu0 %v47
    %747 = vmatpush1.msra.mxu0 %v46
    %748 = vmatprep.subr.mxu0 %v45
    %749 = vmatpush1.msra.mxu0 %v44
    %750 = vmatprep.subr.mxu0 %v43
    %751 = vmatpush1.msra.mxu0 %v42
    %752 = vmatprep.subr.mxu0 0.0
    %753 = vmatpush2.msra.mxu0 0.0
    %754 = vmatprep.subr.mxu0 0.0
    %755 = vmatpush2.msra.mxu0 0.0
    %756 = vmatprep.subr.mxu0 0.0
    %757 = vmatpush2.msra.mxu0 0.0
    %758 = vmatprep.subr.mxu0 0.0
    %759 = vmatpush2.msra.mxu0 0.0
    %760 = vmatprep.subr.mxu0 0.0
    %761 = vmatpush2.msra.mxu0 0.0
    %762 = vmatprep.subr.mxu0 0.0
    %763 = vmatpush2.msra.mxu0 0.0
    %764 = vmatprep.subr.mxu0 0.0
    %765 = vmatpush2.msra.mxu0 0.0
    %766 = vmatprep.subr.mxu0 0.0
    %767 = vmatpush2.msra.mxu0 0.0
    %768 = vmatprep.subr.mxu0 0.0
    %769 = vmatpush2.msra.mxu0 0.0
    %770 = vmatprep.subr.mxu0 0.0
    %771 = vmatpush2.msra.mxu0 0.0
    %772 = vmatprep.subr.mxu0 0.0
    %773 = vmatpush2.msra.mxu0 0.0
    %774 = vmatprep.subr.mxu0 0.0
    %775 = vmatpush2.msra.mxu0 0.0
    %776 = vmatprep.subr.mxu0 0.0
    %777 = vmatpush2.msra.mxu0 0.0
    %778 = vmatprep.subr.mxu0 0.0
    %779 = vmatpush2.msra.mxu0 0.0
    %780 = vmatprep.subr.mxu0 0.0
    %781 = vmatpush2.msra.mxu0 0.0
    %782 = vmatprep.subr.mxu0 0.0
    %783 = vmatpush2.msra.mxu0 0.0
    %784 = vmatprep.mubr.f32.mxu0 0.0
    %785 = vmatmul.mubr.f32.gmra.mxu0 %v718
    %v786 = vpop.f32.mrf.mxu0
    %v787 = vadd.f32 0.0, %v786
    %v788 = vpop.f32.mrf.mxu0
    %v789 = vadd.f32 0.0, %v788
    %790 = vdwg.mxu0
    %v791 = vadd.f32 %v713, %v787
    %v792 = vadd.f32 %v714, %v789
    %v793 = vtanh.pop %v791
    %v794 = vtanh.pop %v792
    %v795 = vmul.f32 %v793, 0.5
    %v796 = vmul.f32 %v794, 0.5
    %v797 = vadd.f32 %v795, 0.5
    %v798 = vadd.f32 %v796, 0.5
    %v799 = vsel %vm65, %v793, %v797
    %v800 = vsel %vm66, %v794, %v798
    %v802 = vrot.slane %v683, 4
    %v804 = vmul.f32 %v799, %v802
    %v805 = vmul.f32 %v799, %v800
    %807 = vrot.lane.b32.xlu0 %v805, 64
    %v808 = vpop.permute.xlu0 %807
    %v810 = vadd.f32 %v804, %v808
    %v811 = vtanh.pop %v810
    %v812 = vmul.f32 %v800, %v811
    %814 = vset.pattern.permute.xlu0 64
    %815 = vperm.xlu0 %814, %v812
    %v816 = vpop.permute.xlu0 %815
    %v818 = vsel %vm697, %v816, 0.0
    %v819 = vadd.f32 %v706, %v818
    %820 = vset.pattern.permute.xlu0 127
    %821 = vperm.xlu0 %820, %v812
    %v822 = vpop.permute.xlu0 %821
    %v824 = vsel %vm686, %v822, 0.0
    %v826 = vrot.slane %v824, 5
    %v828 = vadd.f32 %v819, %v826
    %829 = vrot.lane.b32.xlu0 %v812, 64
    %v830 = vpop.permute.xlu0 %829
    %v831 = vsel %vm223, %v830, 0
    %833 = vmatprep.subr.mxu0 0.0
    %834 = vmatpush1.msra.mxu0 0.0
    %835 = vmatprep.subr.mxu0 0.0
    %836 = vmatpush1.msra.mxu0 0.0
    %837 = vmatprep.subr.mxu0 0.0
    %838 = vmatpush1.msra.mxu0 0.0
    %839 = vmatprep.subr.mxu0 0.0
    %840 = vmatpush1.msra.mxu0 0.0
    %841 = vmatprep.subr.mxu0 0.0
    %842 = vmatpush1.msra.mxu0 0.0
    %843 = vmatprep.subr.mxu0 0.0
    %844 = vmatpush1.msra.mxu0 0.0
    %845 = vmatprep.subr.mxu0 0.0
    %846 = vmatpush1.msra.mxu0 0.0
    %847 = vmatprep.subr.mxu0 0.0
    %848 = vmatpush1.msra.mxu0 0.0
    %849 = vmatprep.subr.mxu0 %v57
    %850 = vmatpush1.msra.mxu0 %v56
    %851 = vmatprep.subr.mxu0 %v55
    %852 = vmatpush1.msra.mxu0 %v54
    %853 = vmatprep.subr.mxu0 %v53
    %854 = vmatpush1.msra.mxu0 %v52
    %855 = vmatprep.subr.mxu0 %v51
    %856 = vmatpush1.msra.mxu0 %v50
    %857 = vmatprep.subr.mxu0 %v49
    %858 = vmatpush1.msra.mxu0 %v48
    %859 = vmatprep.subr.mxu0 %v47
    %860 = vmatpush1.msra.mxu0 %v46
    %861 = vmatprep.subr.mxu0 %v45
    %862 = vmatpush1.msra.mxu0 %v44
    %863 = vmatprep.subr.mxu0 %v43
    %864 = vmatpush1.msra.mxu0 %v42
    %865 = vmatprep.subr.mxu0 0.0
    %866 = vmatpush2.msra.mxu0 0.0
    %867 = vmatprep.subr.mxu0 0.0
    %868 = vmatpush2.msra.mxu0 0.0
    %869 = vmatprep.subr.mxu0 0.0
    %870 = vmatpush2.msra.mxu0 0.0
    %871 = vmatprep.subr.mxu0 0.0
    %872 = vmatpush2.msra.mxu0 0.0
    %873 = vmatprep.subr.mxu0 0.0
    %874 = vmatpush2.msra.mxu0 0.0
    %875 = vmatprep.subr.mxu0 0.0
    %876 = vmatpush2.msra.mxu0 0.0
    %877 = vmatprep.subr.mxu0 0.0
    %878 = vmatpush2.msra.mxu0 0.0
    %879 = vmatprep.subr.mxu0 0.0
    %880 = vmatpush2.msra.mxu0 0.0
    %881 = vmatprep.subr.mxu0 0.0
    %882 = vmatpush2.msra.mxu0 0.0
    %883 = vmatprep.subr.mxu0 0.0
    %884 = vmatpush2.msra.mxu0 0.0
    %885 = vmatprep.subr.mxu0 0.0
    %886 = vmatpush2.msra.mxu0 0.0
    %887 = vmatprep.subr.mxu0 0.0
    %888 = vmatpush2.msra.mxu0 0.0
    %889 = vmatprep.subr.mxu0 0.0
    %890 = vmatpush2.msra.mxu0 0.0
    %891 = vmatprep.subr.mxu0 0.0
    %892 = vmatpush2.msra.mxu0 0.0
    %893 = vmatprep.subr.mxu0 0.0
    %894 = vmatpush2.msra.mxu0 0.0
    %895 = vmatprep.subr.mxu0 0.0
    %896 = vmatpush2.msra.mxu0 0.0
    %897 = vmatprep.mubr.f32.mxu0 0.0
    %898 = vmatmul.mubr.f32.gmra.mxu0 %v831
    %v899 = vpop.f32.mrf.mxu0
    %v900 = vadd.f32 0.0, %v899
    %v901 = vpop.f32.mrf.mxu0
    %v902 = vadd.f32 0.0, %v901
    %903 = vdwg.mxu0
    %v906 = vrot.slane %v900, 4
    %v907 = vrot.slane %v902, 4
    %v910 = vadd.f32 %v713, %v906
    %v911 = vadd.f32 %v714, %v907
    %v912 = vtanh.pop %v910
    %v913 = vtanh.pop %v911
    %v914 = vmul.f32 %v912, 0.5
    %v915 = vmul.f32 %v913, 0.5
    %v916 = vadd.f32 %v914, 0.5
    %v917 = vadd.f32 %v915, 0.5
    %v918 = vsel %vm65, %v912, %v916
    %v919 = vsel %vm66, %v913, %v917
    %v921 = vrot.slane %v810, 4
    %v923 = vmul.f32 %v918, %v921
    %v924 = vmul.f32 %v918, %v919
    %926 = vrot.lane.b32.xlu0 %v924, 64
    %v927 = vpop.permute.xlu0 %926
    %v929 = vadd.f32 %v923, %v927
    %v930 = vtanh.pop %v929
    %v931 = vmul.f32 %v919, %v930
    %933 = vset.pattern.permute.xlu0 64
    %934 = vperm.xlu0 %933, %v931
    %v935 = vpop.permute.xlu0 %934
    %v937 = vsel %vm573, %v935, 0.0
    %v939 = vrot.slane %v937, 4
    %v941 = vadd.f32 %v828, %v939
    %942 = vset.pattern.permute.xlu0 127
    %943 = vperm.xlu0 %942, %v931
    %v944 = vpop.permute.xlu0 %943
    %v946 = vsel %vm565, %v944, 0.0
    %v948 = vrot.slane %v946, 1
    %v950 = vadd.f32 %v941, %v948
    %v953 = vrot.slane %v167, 4
    %v954 = vrot.slane %v169, 4
    %v957 = vsel %vm213, %v185, %v953
    %v958 = vsel %vm214, %v187, %v954
    %v959 = vrot.slane %v931, 4
    %960 = vrot.lane.b32.xlu0 %v959, 64
    %v961 = vpop.permute.xlu0 %960
    %v962 = vsel %vm223, %v961, 0
    %964 = vmatprep.subr.mxu0 0.0
    %965 = vmatpush1.msra.mxu0 0.0
    %966 = vmatprep.subr.mxu0 0.0
    %967 = vmatpush1.msra.mxu0 0.0
    %968 = vmatprep.subr.mxu0 0.0
    %969 = vmatpush1.msra.mxu0 0.0
    %970 = vmatprep.subr.mxu0 0.0
    %971 = vmatpush1.msra.mxu0 0.0
    %972 = vmatprep.subr.mxu0 0.0
    %973 = vmatpush1.msra.mxu0 0.0
    %974 = vmatprep.subr.mxu0 0.0
    %975 = vmatpush1.msra.mxu0 0.0
    %976 = vmatprep.subr.mxu0 0.0
    %977 = vmatpush1.msra.mxu0 0.0
    %978 = vmatprep.subr.mxu0 0.0
    %979 = vmatpush1.msra.mxu0 0.0
    %980 = vmatprep.subr.mxu0 %v57
    %981 = vmatpush1.msra.mxu0 %v56
    %982 = vmatprep.subr.mxu0 %v55
    %983 = vmatpush1.msra.mxu0 %v54
    %984 = vmatprep.subr.mxu0 %v53
    %985 = vmatpush1.msra.mxu0 %v52
    %986 = vmatprep.subr.mxu0 %v51
    %987 = vmatpush1.msra.mxu0 %v50
    %988 = vmatprep.subr.mxu0 %v49
    %989 = vmatpush1.msra.mxu0 %v48
    %990 = vmatprep.subr.mxu0 %v47
    %991 = vmatpush1.msra.mxu0 %v46
    %992 = vmatprep.subr.mxu0 %v45
    %993 = vmatpush1.msra.mxu0 %v44
    %994 = vmatprep.subr.mxu0 %v43
    %995 = vmatpush1.msra.mxu0 %v42
    %996 = vmatprep.subr.mxu0 0.0
    %997 = vmatpush2.msra.mxu0 0.0
    %998 = vmatprep.subr.mxu0 0.0
    %999 = vmatpush2.msra.mxu0 0.0
    %1000 = vmatprep.subr.mxu0 0.0
    %1001 = vmatpush2.msra.mxu0 0.0
    %1002 = vmatprep.subr.mxu0 0.0
    %1003 = vmatpush2.msra.mxu0 0.0
    %1004 = vmatprep.subr.mxu0 0.0
    %1005 = vmatpush2.msra.mxu0 0.0
    %1006 = vmatprep.subr.mxu0 0.0
    %1007 = vmatpush2.msra.mxu0 0.0
    %1008 = vmatprep.subr.mxu0 0.0
    %1009 = vmatpush2.msra.mxu0 0.0
    %1010 = vmatprep.subr.mxu0 0.0
    %1011 = vmatpush2.msra.mxu0 0.0
    %1012 = vmatprep.subr.mxu0 0.0
    %1013 = vmatpush2.msra.mxu0 0.0
    %1014 = vmatprep.subr.mxu0 0.0
    %1015 = vmatpush2.msra.mxu0 0.0
    %1016 = vmatprep.subr.mxu0 0.0
    %1017 = vmatpush2.msra.mxu0 0.0
    %1018 = vmatprep.subr.mxu0 0.0
    %1019 = vmatpush2.msra.mxu0 0.0
    %1020 = vmatprep.subr.mxu0 0.0
    %1021 = vmatpush2.msra.mxu0 0.0
    %1022 = vmatprep.subr.mxu0 0.0
    %1023 = vmatpush2.msra.mxu0 0.0
    %1024 = vmatprep.subr.mxu0 0.0
    %1025 = vmatpush2.msra.mxu0 0.0
    %1026 = vmatprep.subr.mxu0 0.0
    %1027 = vmatpush2.msra.mxu0 0.0
    %1028 = vmatprep.mubr.f32.mxu0 0.0
    %1029 = vmatmul.mubr.f32.gmra.mxu0 %v962
    %v1030 = vpop.f32.mrf.mxu0
    %v1031 = vadd.f32 0.0, %v1030
    %v1032 = vpop.f32.mrf.mxu0
    %v1033 = vadd.f32 0.0, %v1032
    %1034 = vdwg.mxu0
    %v1035 = vadd.f32 %v957, %v1031
    %v1036 = vadd.f32 %v958, %v1033
    %v1037 = vtanh.pop %v1035
    %v1038 = vtanh.pop %v1036
    %v1039 = vmul.f32 %v1037, 0.5
    %v1040 = vmul.f32 %v1038, 0.5
    %v1041 = vadd.f32 %v1039, 0.5
    %v1042 = vadd.f32 %v1040, 0.5
    %v1043 = vsel %vm65, %v1037, %v1041
    %v1044 = vsel %vm66, %v1038, %v1042
    %v1046 = vrot.slane %v929, 4
    %v1048 = vmul.f32 %v1043, %v1046
    %v1049 = vmul.f32 %v1043, %v1044
    %1051 = vrot.lane.b32.xlu0 %v1049, 64
    %v1052 = vpop.permute.xlu0 %1051
    %v1054 = vadd.f32 %v1048, %v1052
    %v1055 = vtanh.pop %v1054
    %v1056 = vmul.f32 %v1044, %v1055
    %1058 = vset.pattern.permute.xlu0 64
    %1059 = vperm.xlu0 %1058, %v1056
    %v1060 = vpop.permute.xlu0 %1059
    %v1062 = vsel %vm449, %v1060, 0.0
    %v1063 = vadd.f32 %v950, %v1062
    %1064 = vset.pattern.permute.xlu0 127
    %1065 = vperm.xlu0 %1064, %v1056
    %v1066 = vpop.permute.xlu0 %1065
    %v1068 = vsel %vm438, %v1066, 0.0
    %v1070 = vrot.slane %v1068, 5
    %v1072 = vadd.f32 %v1063, %v1070
    %1073 = vrot.lane.b32.xlu0 %v1056, 64
    %v1074 = vpop.permute.xlu0 %1073
    %v1075 = vsel %vm223, %v1074, 0
    %1077 = vmatprep.subr.mxu0 0.0
    %1078 = vmatpush1.msra.mxu0 0.0
    %1079 = vmatprep.subr.mxu0 0.0
    %1080 = vmatpush1.msra.mxu0 0.0
    %1081 = vmatprep.subr.mxu0 0.0
    %1082 = vmatpush1.msra.mxu0 0.0
    %1083 = vmatprep.subr.mxu0 0.0
    %1084 = vmatpush1.msra.mxu0 0.0
    %1085 = vmatprep.subr.mxu0 0.0
    %1086 = vmatpush1.msra.mxu0 0.0
    %1087 = vmatprep.subr.mxu0 0.0
    %1088 = vmatpush1.msra.mxu0 0.0
    %1089 = vmatprep.subr.mxu0 0.0
    %1090 = vmatpush1.msra.mxu0 0.0
    %1091 = vmatprep.subr.mxu0 0.0
    %1092 = vmatpush1.msra.mxu0 0.0
    %1093 = vmatprep.subr.mxu0 %v57
    %1094 = vmatpush1.msra.mxu0 %v56
    %1095 = vmatprep.subr.mxu0 %v55
    %1096 = vmatpush1.msra.mxu0 %v54
    %1097 = vmatprep.subr.mxu0 %v53
    %1098 = vmatpush1.msra.mxu0 %v52
    %1099 = vmatprep.subr.mxu0 %v51
    %1100 = vmatpush1.msra.mxu0 %v50
    %1101 = vmatprep.subr.mxu0 %v49
    %1102 = vmatpush1.msra.mxu0 %v48
    %1103 = vmatprep.subr.mxu0 %v47
    %1104 = vmatpush1.msra.mxu0 %v46
    %1105 = vmatprep.subr.mxu0 %v45
    %1106 = vmatpush1.msra.mxu0 %v44
    %1107 = vmatprep.subr.mxu0 %v43
    %1108 = vmatpush1.msra.mxu0 %v42
    %1109 = vmatprep.subr.mxu0 0.0
    %1110 = vmatpush2.msra.mxu0 0.0
    %1111 = vmatprep.subr.mxu0 0.0
    %1112 = vmatpush2.msra.mxu0 0.0
    %1113 = vmatprep.subr.mxu0 0.0
    %1114 = vmatpush2.msra.mxu0 0.0
    %1115 = vmatprep.subr.mxu0 0.0
    %1116 = vmatpush2.msra.mxu0 0.0
    %1117 = vmatprep.subr.mxu0 0.0
    %1118 = vmatpush2.msra.mxu0 0.0
    %1119 = vmatprep.subr.mxu0 0.0
    %1120 = vmatpush2.msra.mxu0 0.0
    %1121 = vmatprep.subr.mxu0 0.0
    %1122 = vmatpush2.msra.mxu0 0.0
    %1123 = vmatprep.subr.mxu0 0.0
    %1124 = vmatpush2.msra.mxu0 0.0
    %1125 = vmatprep.subr.mxu0 0.0
    %1126 = vmatpush2.msra.mxu0 0.0
    %1127 = vmatprep.subr.mxu0 0.0
    %1128 = vmatpush2.msra.mxu0 0.0
    %1129 = vmatprep.subr.mxu0 0.0
    %1130 = vmatpush2.msra.mxu0 0.0
    %1131 = vmatprep.subr.mxu0 0.0
    %1132 = vmatpush2.msra.mxu0 0.0
    %1133 = vmatprep.subr.mxu0 0.0
    %1134 = vmatpush2.msra.mxu0 0.0
    %1135 = vmatprep.subr.mxu0 0.0
    %1136 = vmatpush2.msra.mxu0 0.0
    %1137 = vmatprep.subr.mxu0 0.0
    %1138 = vmatpush2.msra.mxu0 0.0
    %1139 = vmatprep.subr.mxu0 0.0
    %1140 = vmatpush2.msra.mxu0 0.0
    %1141 = vmatprep.mubr.f32.mxu0 0.0
    %1142 = vmatmul.mubr.f32.gmra.mxu0 %v1075
    %v1143 = vpop.f32.mrf.mxu0
    %v1144 = vadd.f32 0.0, %v1143
    %v1145 = vpop.f32.mrf.mxu0
    %v1146 = vadd.f32 0.0, %v1145
    %1147 = vdwg.mxu0
    %v1150 = vrot.slane %v1144, 4
    %v1151 = vrot.slane %v1146, 4
    %v1154 = vadd.f32 %v957, %v1150
    %v1155 = vadd.f32 %v958, %v1151
    %v1156 = vtanh.pop %v1154
    %v1157 = vtanh.pop %v1155
    %v1158 = vmul.f32 %v1156, 0.5
    %v1159 = vmul.f32 %v1157, 0.5
    %v1160 = vadd.f32 %v1158, 0.5
    %v1161 = vadd.f32 %v1159, 0.5
    %v1162 = vsel %vm65, %v1156, %v1160
    %v1163 = vsel %vm66, %v1157, %v1161
    %v1165 = vrot.slane %v1054, 4
    %v1167 = vmul.f32 %v1162, %v1165
    %v1168 = vmul.f32 %v1162, %v1163
    %1170 = vrot.lane.b32.xlu0 %v1168, 64
    %v1171 = vpop.permute.xlu0 %1170
    %v1173 = vadd.f32 %v1167, %v1171
    %v1174 = vtanh.pop %v1173
    %v1175 = vmul.f32 %v1163, %v1174
    %1177 = vset.pattern.permute.xlu0 64
    %1178 = vperm.xlu0 %1177, %v1175
    %v1179 = vpop.permute.xlu0 %1178
    %v1181 = vsel %vm325, %v1179, 0.0
    %v1183 = vrot.slane %v1181, 4
    %v1185 = vadd.f32 %v1072, %v1183
    %1186 = vset.pattern.permute.xlu0 127
    %1187 = vperm.xlu0 %1186, %v1175
    %v1188 = vpop.permute.xlu0 %1187
    %v1190 = vsel %vm317, %v1188, 0.0
    %v1192 = vrot.slane %v1190, 1
    %v1194 = vadd.f32 %v1185, %v1192
    %v1195 = vmul.f32 %v1194, 0.5
    %v1196 = vld [vmem:[#allocation2] sm:$0x1]
    %s1197 = vtos %v1196
    %v1198 = vstv %s1197
    %v1199 = vmul.f32 %v1195, %v1198
    %v1200 = vld [vmem:[#allocation3] sm:$0x1]
    %s1201 = vtos %v1200
    %v1202 = vstv %s1201
    %v1203 = vadd.f32 %v1199, %v1202
    %vm1204 = vcmask 60419
    %1205 = vst.msk [vmem:[#allocation7 - $0x3] sm:$0x8] %vm1204, %v1203
    // Predicated region
    $region30: #{tpu_custom_call.1} parent=1 // pred_check
      _
    $region31: #{tpu_custom_call.1} parent=1 // pred_check_branch
      %1207 = sbr.rel (0) target = $region33
    $region32: #{tpu_custom_call.1} parent=1 // pred_region
      %s1209 = ssub.s32 16, 16
      %1210 = vsyncadd [#allocation6], %s1209
      %s1212 = sshll.u32 [#allocation7], 4
      %s1213 = int_to_ptr.vmem [resolvable:$true] %s1212
      %1215 = dma.vmem_to_hbm [thread:$0]  %s1213, 16, %s6, [#allocation6]
    $region33: #{tpu_custom_call.1} parent=1 // pred_fallthru
      _
    // Predicated region
    $region34: #{tpu_custom_call.1} parent=1 // pred_check
      _
    $region35: #{tpu_custom_call.1} parent=1 // pred_check_branch
      %1217 = sbr.rel (0) target = $region37
    $region36: #{tpu_custom_call.1} parent=1 // pred_region
      %1218 = dma.done [#allocation6], 16
    $region37: #{tpu_custom_call.1} parent=1 // pred_fallthru
      _
    %1219 = vsyncpa [#allocation5], 1
    %1220 = vsyncpa [#allocation6], 1

</llo_original>
